<compile_context>
chip_gen: v7x
topology: tpu7x:2x2x1
jax: 0.10.0
libtpu: 0.0.40
codegen_flags: <defaults>
</compile_context>

<pallas_src>
import math

import jax
import jax.numpy as jnp
from jax.experimental import pallas as pl
from jax.experimental.pallas import tpu as pltpu

IN_DIM = 100
IN_PAD = 128           # K padded to a full lane tile
H1 = 128
H2 = 256
OUT_DIM = 3 * 64 * 64  # 12288
TN = 3072              # fc3 output-column tile (12288 / 3072 = 4 steps)


def _round_up(n, m):
    return ((n + m - 1) // m) * m


def _pick_bm(B):
    """Batch tile: multiple of 8 (sublane aligned), capped at 512, with a
    tail-aware choice for large B so we do not pad hundreds of dead rows
    through fc3 + tanh + HBM output writes."""
    b8 = _round_up(B, 8)
    if b8 <= 512:
        return b8                       # single batch tile, <=7 padded rows
    for bm in (512, 256, 128):
        if _round_up(B, bm) - B <= bm // 2:
            return bm
    return 128                          # bounded waste (<128 padded rows)


def _mlp_kernel(x_ref, w1_ref, b1_ref, w2_ref, b2_ref, w3_ref, b3_ref, o_ref):
    # fc1/fc2 are tiny relative to the fc3 column tile; recompute them every
    # grid step so there is no carried state and both grid axes stay
    # 'parallel' (v7x megacore can shard the column stream).
    h1 = jnp.dot(x_ref[...], w1_ref[...],
                 preferred_element_type=jnp.float32) + b1_ref[...]
    h1 = jnp.maximum(h1, 0.0)                                    # relu
    h2 = jnp.dot(h1, w2_ref[...],
                 preferred_element_type=jnp.float32) + b2_ref[...]
    h2 = jnp.maximum(h2, 0.0)                                    # relu
    # fc3: cast the activations to the (possibly bf16) weight dtype for the
    # MXU's native path; accumulate in f32; bias add + tanh stay f32.
    y = jnp.dot(h2.astype(w3_ref.dtype), w3_ref[...],
                preferred_element_type=jnp.float32) + b3_ref[...]
    o_ref[...] = jnp.tanh(y)                                     # tanh


def design_generator_forward(x, params, *, w3_dtype=jnp.bfloat16,
                             flat_output=False):
    w1, b1, w2, b2, w3, b3 = params
    B = x.shape[0]
    assert x.shape == (B, IN_DIM)

    bm = _pick_bm(B)
    b_pad = _round_up(B, bm)

    # Zero-pad batch rows and the K=100 contraction to 128 (exact: padded
    # columns contribute 0 to the fc1 dot).
    x_p = jnp.pad(x, ((0, b_pad - B), (0, IN_PAD - IN_DIM)))
    w1_p = jnp.pad(w1, ((0, IN_PAD - IN_DIM), (0, 0)))

    # Dominant stream: w3 (12.6 MB f32 / 6.3 MB bf16).  b3 stays f32 (49 KB,
    # negligible bandwidth, slightly better accuracy).
    w3_c = w3.astype(w3_dtype)

    # Biases as (1, N) 2-D rows for TPU-friendly layout.
    b1r = b1.reshape(1, H1)
    b2r = b2.reshape(1, H2)
    b3r = b3.reshape(1, OUT_DIM)

    # Column axis OUTER, batch axis INNER: w3/b3 block index is constant over
    # the inner axis, so Pallas fetches each w3 tile from HBM exactly once.
    grid = (OUT_DIM // TN, b_pad // bm)

    out_flat = pl.pallas_call(
        _mlp_kernel,
        out_shape=jax.ShapeDtypeStruct((b_pad, OUT_DIM), jnp.float32),
        grid_spec=pltpu.PrefetchScalarGridSpec(
            num_scalar_prefetch=0,
            grid=grid,
            in_specs=[
                pl.BlockSpec((bm, IN_PAD), lambda j, i: (i, 0)),   # x tile
                pl.BlockSpec((IN_PAD, H1), lambda j, i: (0, 0)),   # w1
                pl.BlockSpec((1, H1), lambda j, i: (0, 0)),        # b1
                pl.BlockSpec((H1, H2), lambda j, i: (0, 0)),       # w2
                pl.BlockSpec((1, H2), lambda j, i: (0, 0)),        # b2
                pl.BlockSpec((H2, TN), lambda j, i: (0, j)),       # w3 tile
                pl.BlockSpec((1, TN), lambda j, i: (0, j)),        # b3 tile
            ],
            out_specs=pl.BlockSpec((bm, TN), lambda j, i: (i, j)),
        ),
        compiler_params=pltpu.CompilerParams(
            # No carried scratch -> both axes independent; lets v7x shard the
            # 4 column steps 2/2 across its two TensorCores.
            dimension_semantics=("parallel", "parallel"),
            # Peak double-buffered working set (bm=512, TN=3072, bf16 w3) is
            # ~16-17 MiB; raise above v5e's 16 MiB default scoped limit while
            # staying inside every generation's physical VMEM.
            vmem_limit_bytes=32 * 1024 * 1024,
        ),
    )(x_p, w1_p, b1r, w2, b2r, w3_c, b3r)

    out_flat = out_flat[:B]
    if flat_output:
        # Lane-dense (B, 12288); avoids the hidden relayout copy that the
        # 64-wide minor dim of NCHW forces for large B.
        return out_flat
    # Match torch's x.view(-1, 3, 64, 64)  (NCHW).
    return out_flat.reshape(-1, 3, 64, 64)


def init_params(key):
    """Deterministic init mimicking nn.Linear's U(-1/sqrt(fan_in), 1/sqrt(fan_in))."""
    ks = jax.random.split(key, 6)

    def linear(kw, kb, fan_in, fan_out):
        bound = 1.0 / math.sqrt(fan_in)
        w = jax.random.uniform(kw, (fan_in, fan_out), jnp.float32, -bound, bound)
        b = jax.random.uniform(kb, (fan_out,), jnp.float32, -bound, bound)
        return w, b

    w1, b1 = linear(ks[0], ks[1], IN_DIM, H1)
    w2, b2 = linear(ks[2], ks[3], H1, H2)
    w3, b3 = linear(ks[4], ks[5], H2, OUT_DIM)
    return (w1, b1, w2, b2, w3, b3)


if __name__ == "__main__":
    key = jax.random.PRNGKey(0)
    kp, kx = jax.random.split(key)
    params = init_params(kp)

    B = 2
    x = jax.random.normal(kx, (B, IN_DIM), dtype=jnp.float32)

    # Plain-JAX reference (same math as the PyTorch forward).
    w1, b1, w2, b2, w3, b3 = params
    ref = jnp.maximum(x @ w1 + b1, 0.0)
    ref = jnp.maximum(ref @ w2 + b2, 0.0)
    ref = jnp.tanh(ref @ w3 + b3).reshape(-1, 3, 64, 64)

    # 1) Default (bf16-streamed w3, f32 accumulate): relaxed tolerance.
    out_bf16 = design_generator_forward(x, params)
    out_bf16 = jax.block_until_ready(out_bf16)
    assert out_bf16.shape == (B, 3, 64, 64), out_bf16.shape
    assert jnp.allclose(out_bf16, ref, atol=2e-2, rtol=2e-2)

    # 2) Strict-accuracy path (f32 w3 storage): 1e-5 check.
    out_f32 = design_generator_forward(x, params, w3_dtype=jnp.float32)
    out_f32 = jax.block_until_ready(out_f32)
    assert out_f32.shape == (B, 3, 64, 64), out_f32.shape
    assert jnp.allclose(out_f32, ref, atol=1e-5, rtol=1e-5)

    print("KERNEL_OK")
</pallas_src>

<mosaic_0001>
module attributes {stable_mosaic.version = 11 : i64} {
  func.func @_mlp_kernel(%arg0: i32, %arg1: i32, %arg2: memref<8x128xf32, #tpu.memory_space<vmem>>, %arg3: memref<128x128xf32, #tpu.memory_space<vmem>>, %arg4: memref<1x128xf32, #tpu.memory_space<vmem>>, %arg5: memref<128x256xf32, #tpu.memory_space<vmem>>, %arg6: memref<1x256xf32, #tpu.memory_space<vmem>>, %arg7: memref<256x3072xbf16, #tpu.memory_space<vmem>>, %arg8: memref<1x3072xf32, #tpu.memory_space<vmem>>, %arg9: memref<8x3072xf32, #tpu.memory_space<vmem>>) attributes {dimension_semantics = [#tpu.dimension_semantics<parallel>, #tpu.dimension_semantics<parallel>], iteration_bounds = array<i64: 4, 1>, scalar_prefetch = 0 : i64, scratch_operands = 0 : i64, tpu.core_type = #tpu.core_type<tc>, window_params = [{transform_indices = @transform_0, window_bounds = array<i64: 8, 128>}, {pipeline_mode = #tpu.pipeline_mode<synchronous>, transform_indices = @transform_1, window_bounds = array<i64: 128, 128>}, {pipeline_mode = #tpu.pipeline_mode<synchronous>, transform_indices = @transform_2, window_bounds = array<i64: 1, 128>}, {pipeline_mode = #tpu.pipeline_mode<synchronous>, transform_indices = @transform_3, window_bounds = array<i64: 128, 256>}, {pipeline_mode = #tpu.pipeline_mode<synchronous>, transform_indices = @transform_4, window_bounds = array<i64: 1, 256>}, {transform_indices = @transform_5, window_bounds = array<i64: 256, 3072>}, {transform_indices = @transform_6, window_bounds = array<i64: 1, 3072>}, {transform_indices = @transform_7, window_bounds = array<i64: 8, 3072>}]} {
    %c0 = arith.constant 0 : index
    %c0_0 = arith.constant 0 : index
    %0 = vector.load %arg2[%c0, %c0_0] : memref<8x128xf32, #tpu.memory_space<vmem>>, vector<8x128xf32>
    %c0_1 = arith.constant 0 : index
    %c0_2 = arith.constant 0 : index
    %1 = vector.load %arg3[%c0_1, %c0_2] : memref<128x128xf32, #tpu.memory_space<vmem>>, vector<128x128xf32>
    %cst = arith.constant dense<0.000000e+00> : vector<8x128xf32>
    %2 = tpu.matmul %0, %1, %cst {dimension_numbers = #tpu.dot_dimension_numbers<[1], [0], [0], [1], [0, 0, 1, 1], [], []>} : vector<8x128xf32>, vector<128x128xf32>, vector<8x128xf32> -> vector<8x128xf32>
    %c0_3 = arith.constant 0 : index
    %c0_4 = arith.constant 0 : index
    %3 = vector.load %arg4[%c0_3, %c0_4] : memref<1x128xf32, #tpu.memory_space<vmem>>, vector<1x128xf32>
    %4 = vector.broadcast %3 : vector<1x128xf32> to vector<8x128xf32>
    %5 = arith.addf %2, %4 : vector<8x128xf32>
    %cst_5 = arith.constant 0.000000e+00 : f32
    %6 = vector.broadcast %cst_5 : f32 to vector<8x128xf32>
    %7 = arith.maximumf %5, %6 : vector<8x128xf32>
    %c0_6 = arith.constant 0 : index
    %c0_7 = arith.constant 0 : index
    %8 = vector.load %arg5[%c0_6, %c0_7] : memref<128x256xf32, #tpu.memory_space<vmem>>, vector<128x256xf32>
    %cst_8 = arith.constant dense<0.000000e+00> : vector<8x256xf32>
    %9 = tpu.matmul %7, %8, %cst_8 {dimension_numbers = #tpu.dot_dimension_numbers<[1], [0], [0], [1], [0, 0, 1, 1], [], []>} : vector<8x128xf32>, vector<128x256xf32>, vector<8x256xf32> -> vector<8x256xf32>
    %c0_9 = arith.constant 0 : index
    %c0_10 = arith.constant 0 : index
    %10 = vector.load %arg6[%c0_9, %c0_10] : memref<1x256xf32, #tpu.memory_space<vmem>>, vector<1x256xf32>
    %11 = vector.broadcast %10 : vector<1x256xf32> to vector<8x256xf32>
    %12 = arith.addf %9, %11 : vector<8x256xf32>
    %cst_11 = arith.constant 0.000000e+00 : f32
    %13 = vector.broadcast %cst_11 : f32 to vector<8x256xf32>
    %14 = arith.maximumf %12, %13 : vector<8x256xf32>
    %15 = arith.truncf %14 : vector<8x256xf32> to vector<8x256xbf16>
    %c0_12 = arith.constant 0 : index
    %c0_13 = arith.constant 0 : index
    %16 = vector.load %arg7[%c0_12, %c0_13] : memref<256x3072xbf16, #tpu.memory_space<vmem>>, vector<256x3072xbf16>
    %cst_14 = arith.constant dense<0.000000e+00> : vector<8x3072xf32>
    %17 = tpu.matmul %15, %16, %cst_14 {dimension_numbers = #tpu.dot_dimension_numbers<[1], [0], [0], [1], [0, 0, 1, 1], [], []>} : vector<8x256xbf16>, vector<256x3072xbf16>, vector<8x3072xf32> -> vector<8x3072xf32>
    %c0_15 = arith.constant 0 : index
    %c0_16 = arith.constant 0 : index
    %18 = vector.load %arg8[%c0_15, %c0_16] : memref<1x3072xf32, #tpu.memory_space<vmem>>, vector<1x3072xf32>
    %19 = vector.broadcast %18 : vector<1x3072xf32> to vector<8x3072xf32>
    %20 = arith.addf %17, %19 : vector<8x3072xf32>
    %21 = math.tanh %20 : vector<8x3072xf32>
    %c0_17 = arith.constant 0 : index
    %c0_18 = arith.constant 0 : index
    %22 = vector.load %arg9[%c0_17, %c0_18] : memref<8x3072xf32, #tpu.memory_space<vmem>>, vector<8x3072xf32>
    tpu.vector_store %arg9[%c0_17, %c0_18], %21 {strides = array<i32>} : memref<8x3072xf32, #tpu.memory_space<vmem>>, vector<8x3072xf32>,
    return
  }
  func.func @transform_0(%arg0: i32, %arg1: i32) -> (i32, i32) {
    %c0_i32 = arith.constant 0 : i32
    %c0_i32_0 = arith.constant 0 : i32
    return %arg1, %c0_i32 : i32, i32
  }
  func.func @transform_1(%arg0: i32, %arg1: i32) -> (i32, i32) {
    %c0_i32 = arith.constant 0 : i32
    %c0_i32_0 = arith.constant 0 : i32
    %c0_i32_1 = arith.constant 0 : i32
    return %c0_i32, %c0_i32_0 : i32, i32
  }
  func.func @transform_2(%arg0: i32, %arg1: i32) -> (i32, i32) {
    %c0_i32 = arith.constant 0 : i32
    %c0_i32_0 = arith.constant 0 : i32
    %c0_i32_1 = arith.constant 0 : i32
    return %c0_i32, %c0_i32_0 : i32, i32
  }
  func.func @transform_3(%arg0: i32, %arg1: i32) -> (i32, i32) {
    %c0_i32 = arith.constant 0 : i32
    %c0_i32_0 = arith.constant 0 : i32
    %c0_i32_1 = arith.constant 0 : i32
    return %c0_i32, %c0_i32_0 : i32, i32
  }
  func.func @transform_4(%arg0: i32, %arg1: i32) -> (i32, i32) {
    %c0_i32 = arith.constant 0 : i32
    %c0_i32_0 = arith.constant 0 : i32
    %c0_i32_1 = arith.constant 0 : i32
    return %c0_i32, %c0_i32_0 : i32, i32
  }
  func.func @transform_5(%arg0: i32, %arg1: i32) -> (i32, i32) {
    %c0_i32 = arith.constant 0 : i32
    %c0_i32_0 = arith.constant 0 : i32
    return %c0_i32, %arg0 : i32, i32
  }
  func.func @transform_6(%arg0: i32, %arg1: i32) -> (i32, i32) {
    %c0_i32 = arith.constant 0 : i32
    %c0_i32_0 = arith.constant 0 : i32
    return %c0_i32, %arg0 : i32, i32
  }
  func.func @transform_7(%arg0: i32, %arg1: i32) -> (i32, i32) {
    %c0_i32 = arith.constant 0 : i32
    return %arg1, %arg0 : i32, i32
  }
}

</mosaic_0001>

<llo_original>
// kernel: tpu_custom_call.1
$region0: #{tpu_custom_call.1}
  #allocation0 [shape = 'u32[]', space=smem, size = 0x4, offset = 0x4, fixed_abs, tag = 'smem constant byte address 0x4 - core index']
  #allocation1 [shape = 'u32[144,128]{1,0:T(1,128)}', space=vmem, size = 0x12000, scoped, tag = 'internal scratch']
  %s0 = inlined_call_operand.hbm [shape: f32[8,128], index: 0, kind: input, shape index: {}]
  %s1 = inlined_call_operand.hbm [shape: f32[128,128], index: 1, kind: input, shape index: {}]
  %s2 = inlined_call_operand.hbm [shape: f32[1,128], index: 2, kind: input, shape index: {}]
  %s3 = inlined_call_operand.hbm [shape: f32[128,256], index: 3, kind: input, shape index: {}]
  %s4 = inlined_call_operand.hbm [shape: f32[1,256], index: 4, kind: input, shape index: {}]
  %s5 = inlined_call_operand.hbm [shape: bf16[256,12288], index: 5, kind: input, shape index: {}]
  %s6 = inlined_call_operand.hbm [shape: f32[1,12288], index: 6, kind: input, shape index: {}]
  %s7 = inlined_call_operand.hbm [shape: f32[8,12288], index: 7, kind: output, shape index: {}]
  %s8 = sld [smem:[#allocation0]]
  $region89: #{tpu_custom_call.1} parent=0
    _
  %s10 = ssub.s32 1, %s8
  %s11 = scalar_select 0, %s10, %s8
  $region1: #{tpu_custom_call.1} parent=0
    #allocation2 [shape = 'u8[4096]{0}', space=vmem, size = 0x1000, scoped, tag = 'input window, operand 0, single buffered']
    #allocation3 [shape = 's32[2]{0}', space=sflag, size = 0x8, scoped, tag = 'scoped memory for tpu_custom_call.1']
    #allocation4 [shape = 's32[2]{0}', space=sflag, size = 0x8, scoped, tag = 'scoped memory for tpu_custom_call.1']
    #allocation5 [shape = 'u8[65536]{0}', space=vmem, size = 0x10000, scoped, tag = 'input window, operand 1, single buffered']
    #allocation6 [shape = 's32[1]{0}', space=sflag, size = 0x4, scoped, tag = 'scoped memory for tpu_custom_call.1']
    #allocation7 [shape = 'u8[512]{0}', space=vmem, size = 0x400, scoped, tag = 'input window, operand 2, single buffered']
    #allocation8 [shape = 'u8[131072]{0}', space=vmem, size = 0x20000, scoped, tag = 'input window, operand 3, single buffered']
    #allocation9 [shape = 's32[1]{0}', space=sflag, size = 0x4, scoped, tag = 'scoped memory for tpu_custom_call.1']
    #allocation10 [shape = 'u8[1024]{0}', space=vmem, size = 0x400, scoped, tag = 'input window, operand 4, single buffered']
    #allocation11 [shape = 'u8[3145728]{0}', space=vmem, size = 0x300000, scoped, tag = 'input window, operand 5']
    #allocation12 [shape = 's32[2]{0}', space=sflag, size = 0x8, scoped, tag = 'scoped memory for tpu_custom_call.1']
    #allocation13 [shape = 'u8[24576]{0}', space=vmem, size = 0x6000, scoped, tag = 'input window, operand 6']
    #allocation14 [shape = 'u8[196608]{0}', space=vmem, size = 0x30000, scoped, tag = 'output window, operand 0']
    %12 = vsyncpa [#allocation3], 0
    %13 = vsyncpa [#allocation6], 0
    %14 = vsyncpa [#allocation9], 0
    %15 = vsyncpa [#allocation12], 0
    %s16 = scalar_lea.sflag [#allocation12], 1
    %17 = vsyncpa %s16, 0
    %18 = vsyncpa [#allocation4], 0
    %s19 = scalar_lea.sflag [#allocation4], 1
    %20 = vsyncpa %s19, 0
    loop: start=0, step=1, limit=6
    $region2: #{tpu_custom_call.1} parent=1 // loop_pre_header
      _
    $region3: #{tpu_custom_call.1} parent=1 // loop_header
      %s22 = sphi 0, %s26
      %p23 = scmp.ge.s32.totalorder %s22, 6
      %s29 = sphi 0, %s41
      %s30 = sphi 0, %s37
      %s31 = sphi 0, %s29
      %s32 = sphi 0, %s30
      %s33 = sphi 0, %s31
      %s34 = sphi 0, %s32
      %s44 = sphi 0, %s46
      %s47 = sphi 0, %s44
      %s48 = sphi 0, %s47
      %s64 = sphi 0, %s48
      %s68 = sphi 0, %s68
      %s70 = sphi 0, %s68
      %s71 = sphi 0, %s70
      %s85 = sphi 0, %s71
      %s89 = sphi 0, %s89
      %s91 = sphi 0, %s89
      %s92 = sphi 0, %s91
      %s106 = sphi 0, %s92
      %s110 = sphi 0, %s110
      %s112 = sphi 0, %s110
      %s113 = sphi 0, %s112
      %s127 = sphi 0, %s113
      %s131 = sphi 0, %s131
      %s133 = sphi 0, %s131
      %s134 = sphi 0, %s133
      %s148 = sphi 0, %s134
      %s154 = sphi 0, %s156
      %s157 = sphi 0, %s154
      %s158 = sphi 0, %s157
      %s174 = sphi 0, %s158
      %s180 = sphi 0, %s182
      %s183 = sphi 0, %s180
      %s184 = sphi 0, %s183
      %s200 = sphi 0, %s184
      %s208 = sphi 0, %s210
      %s211 = sphi 0, %s208
      %s212 = sphi 0, %s211
      %s228 = sphi 0, %s212
    $region4: #{tpu_custom_call.1} parent=1 // loop_header_branch
      %25 = sbr.rel (%p23) target = $region8
    $region5: #{tpu_custom_call.1} parent=1 // loop_body
      %s27 = ssub.s32 %s22, 1
      %s28 = ssub.s32 %s22, 2
      %s35 = sadd.s32 1, %s30
      %p36 = scmp.ge.s32.totalorder %s35, 1
      %s37 = scalar_select %p36, 0, %s35
      %s38 = sadd.s32 1, %s29
      %s39 = scalar_select %p36, %s38, %s29
      %p40 = scmp.ge.s32.totalorder %s39, 4
      %s41 = scalar_select %p40, 0, %s39
      %s42 = ssub.s32 %s30, %s37
      %p43 = scmp.eq.s32.totalorder %s42, 0
      %s45 = sadd.s32 %s44, 1
      %s46 = scalar_select %p43, %s44, %s45
      %p49 = pneg %p43
      %p50 = scmp.eq.s32.totalorder %s22, 3
      %p51 = por %p49, %p50
      %p52 = scmp.ne.s32.totalorder %s44, %s47
      %p53 = scmp.eq.s32.totalorder %s22, 0
      %p54 = por %p52, %p53
      %p55 = scmp.ne.s32.totalorder %s44, %s47
      %p56 = scmp.eq.s32.totalorder %s27, 3
      %p57 = por %p55, %p56
      %p58 = scmp.ne.s32.totalorder %s47, %s48
      %p59 = scmp.eq.s32.totalorder %s27, 0
      %p60 = por %p58, %p59
      %p61 = scmp.ne.s32.totalorder %s47, %s48
      %p62 = scmp.eq.s32.totalorder %s28, 3
      %p63 = por %p61, %p62
      %p65 = scmp.ne.s32.totalorder %s48, %s64
      %p66 = scmp.eq.s32.totalorder %s28, 0
      %p67 = por %p65, %p66
      %s69 = sadd.s32 %s68, 1
      %p72 = scmp.eq.s32.totalorder %s22, 3
      %p73 = scmp.ne.s32.totalorder %s68, %s70
      %p74 = scmp.eq.s32.totalorder %s22, 0
      %p75 = por %p73, %p74
      %p76 = scmp.ne.s32.totalorder %s68, %s70
      %p77 = scmp.eq.s32.totalorder %s27, 3
      %p78 = por %p76, %p77
      %p79 = scmp.ne.s32.totalorder %s70, %s71
      %p80 = scmp.eq.s32.totalorder %s27, 0
      %p81 = por %p79, %p80
      %p82 = scmp.ne.s32.totalorder %s70, %s71
      %p83 = scmp.eq.s32.totalorder %s28, 3
      %p84 = por %p82, %p83
      %p86 = scmp.ne.s32.totalorder %s71, %s85
      %p87 = scmp.eq.s32.totalorder %s28, 0
      %p88 = por %p86, %p87
      %s90 = sadd.s32 %s89, 1
      %p93 = scmp.eq.s32.totalorder %s22, 3
      %p94 = scmp.ne.s32.totalorder %s89, %s91
      %p95 = scmp.eq.s32.totalorder %s22, 0
      %p96 = por %p94, %p95
      %p97 = scmp.ne.s32.totalorder %s89, %s91
      %p98 = scmp.eq.s32.totalorder %s27, 3
      %p99 = por %p97, %p98
      %p100 = scmp.ne.s32.totalorder %s91, %s92
      %p101 = scmp.eq.s32.totalorder %s27, 0
      %p102 = por %p100, %p101
      %p103 = scmp.ne.s32.totalorder %s91, %s92
      %p104 = scmp.eq.s32.totalorder %s28, 3
      %p105 = por %p103, %p104
      %p107 = scmp.ne.s32.totalorder %s92, %s106
      %p108 = scmp.eq.s32.totalorder %s28, 0
      %p109 = por %p107, %p108
      %s111 = sadd.s32 %s110, 1
      %p114 = scmp.eq.s32.totalorder %s22, 3
      %p115 = scmp.ne.s32.totalorder %s110, %s112
      %p116 = scmp.eq.s32.totalorder %s22, 0
      %p117 = por %p115, %p116
      %p118 = scmp.ne.s32.totalorder %s110, %s112
      %p119 = scmp.eq.s32.totalorder %s27, 3
      %p120 = por %p118, %p119
      %p121 = scmp.ne.s32.totalorder %s112, %s113
      %p122 = scmp.eq.s32.totalorder %s27, 0
      %p123 = por %p121, %p122
      %p124 = scmp.ne.s32.totalorder %s112, %s113
      %p125 = scmp.eq.s32.totalorder %s28, 3
      %p126 = por %p124, %p125
      %p128 = scmp.ne.s32.totalorder %s113, %s127
      %p129 = scmp.eq.s32.totalorder %s28, 0
      %p130 = por %p128, %p129
      %s132 = sadd.s32 %s131, 1
      %p135 = scmp.eq.s32.totalorder %s22, 3
      %p136 = scmp.ne.s32.totalorder %s131, %s133
      %p137 = scmp.eq.s32.totalorder %s22, 0
      %p138 = por %p136, %p137
      %p139 = scmp.ne.s32.totalorder %s131, %s133
      %p140 = scmp.eq.s32.totalorder %s27, 3
      %p141 = por %p139, %p140
      %p142 = scmp.ne.s32.totalorder %s133, %s134
      %p143 = scmp.eq.s32.totalorder %s27, 0
      %p144 = por %p142, %p143
      %p145 = scmp.ne.s32.totalorder %s133, %s134
      %p146 = scmp.eq.s32.totalorder %s28, 3
      %p147 = por %p145, %p146
      %p149 = scmp.ne.s32.totalorder %s134, %s148
      %p150 = scmp.eq.s32.totalorder %s28, 0
      %p151 = por %p149, %p150
      %s152 = ssub.s32 %s29, %s41
      %p153 = scmp.eq.s32.totalorder %s152, 0
      %s155 = sadd.s32 %s154, 1
      %s156 = scalar_select %p153, %s154, %s155
      %p159 = pneg %p153
      %p160 = scmp.eq.s32.totalorder %s22, 3
      %p161 = por %p159, %p160
      %p162 = scmp.ne.s32.totalorder %s154, %s157
      %p163 = scmp.eq.s32.totalorder %s22, 0
      %p164 = por %p162, %p163
      %p165 = scmp.ne.s32.totalorder %s154, %s157
      %p166 = scmp.eq.s32.totalorder %s27, 3
      %p167 = por %p165, %p166
      %p168 = scmp.ne.s32.totalorder %s157, %s158
      %p169 = scmp.eq.s32.totalorder %s27, 0
      %p170 = por %p168, %p169
      %p171 = scmp.ne.s32.totalorder %s157, %s158
      %p172 = scmp.eq.s32.totalorder %s28, 3
      %p173 = por %p171, %p172
      %p175 = scmp.ne.s32.totalorder %s158, %s174
      %p176 = scmp.eq.s32.totalorder %s28, 0
      %p177 = por %p175, %p176
      %s178 = ssub.s32 %s29, %s41
      %p179 = scmp.eq.s32.totalorder %s178, 0
      %s181 = sadd.s32 %s180, 1
      %s182 = scalar_select %p179, %s180, %s181
      %p185 = pneg %p179
      %p186 = scmp.eq.s32.totalorder %s22, 3
      %p187 = por %p185, %p186
      %p188 = scmp.ne.s32.totalorder %s180, %s183
      %p189 = scmp.eq.s32.totalorder %s22, 0
      %p190 = por %p188, %p189
      %p191 = scmp.ne.s32.totalorder %s180, %s183
      %p192 = scmp.eq.s32.totalorder %s27, 3
      %p193 = por %p191, %p192
      %p194 = scmp.ne.s32.totalorder %s183, %s184
      %p195 = scmp.eq.s32.totalorder %s27, 0
      %p196 = por %p194, %p195
      %p197 = scmp.ne.s32.totalorder %s183, %s184
      %p198 = scmp.eq.s32.totalorder %s28, 3
      %p199 = por %p197, %p198
      %p201 = scmp.ne.s32.totalorder %s184, %s200
      %p202 = scmp.eq.s32.totalorder %s28, 0
      %p203 = por %p201, %p202
      %s204 = ssub.s32 %s30, %s37
      %s205 = ssub.s32 %s29, %s41
      %s206 = sor.u32 %s204, %s205
      %p207 = scmp.eq.s32.totalorder %s206, 0
      %s209 = sadd.s32 %s208, 1
      %s210 = scalar_select %p207, %s208, %s209
      %p213 = pneg %p207
      %p214 = scmp.eq.s32.totalorder %s22, 3
      %p215 = por %p213, %p214
      %p216 = scmp.ne.s32.totalorder %s208, %s211
      %p217 = scmp.eq.s32.totalorder %s22, 0
      %p218 = por %p216, %p217
      %p219 = scmp.ne.s32.totalorder %s208, %s211
      %p220 = scmp.eq.s32.totalorder %s27, 3
      %p221 = por %p219, %p220
      %p222 = scmp.ne.s32.totalorder %s211, %s212
      %p223 = scmp.eq.s32.totalorder %s27, 0
      %p224 = por %p222, %p223
      %p225 = scmp.ne.s32.totalorder %s211, %s212
      %p226 = scmp.eq.s32.totalorder %s28, 3
      %p227 = por %p225, %p226
      %p229 = scmp.ne.s32.totalorder %s212, %s228
      %p230 = scmp.eq.s32.totalorder %s28, 0
      %p231 = por %p229, %p230
      %p232 = scmp.le.s32.totalorder 1, %s22
      %p233 = scmp.lt.s32.totalorder %s22, 5
      %p234 = pnand %p232, %p233
      %p235 = pneg %p234
      // Predicated region
      $region9: #{tpu_custom_call.1} parent=5 // pred_check
        _
      $region10: #{tpu_custom_call.1} parent=5 // pred_check_branch
        %237 = sbr.rel (%p234) target = $region12
      $region11: #{tpu_custom_call.1} parent=5 // pred_region
        %s238 = ssub.s32 %s22, 1
        // Predicated region
        $region13: #{tpu_custom_call.1} parent=11 // pred_check
          %p239 = pneg %p60
        $region14: #{tpu_custom_call.1} parent=11 // pred_check_branch
          %241 = sbr.rel (%p239) target = $region16
        $region15: #{tpu_custom_call.1} parent=11 // pred_region
          %s243 = ssub.s32 128, 128
          %244 = vsyncadd [#allocation3], %s243
          %s245 = smul.addr %s32, 128
          %s246 = scalar_lea.hbm %s0, %s245
          %s248 = sshll.u32 [#allocation2], 4
          %s249 = int_to_ptr.vmem [resolvable:$true] %s248
          %251 = dma.hbm_to_vmem [thread:$0]  %s246, 128, %s249, [#allocation3]
        $region16: #{tpu_custom_call.1} parent=11 // pred_fallthru
          _
        // Predicated region
        $region17: #{tpu_custom_call.1} parent=11 // pred_check
          %p252 = pneg %p81
        $region18: #{tpu_custom_call.1} parent=11 // pred_check_branch
          %254 = sbr.rel (%p252) target = $region20
        $region19: #{tpu_custom_call.1} parent=11 // pred_region
          %s256 = ssub.s32 2048, 2048
          %257 = vsyncadd [#allocation6], %s256
          %s258 = sshll.u32 [#allocation5], 4
          %s259 = int_to_ptr.vmem [resolvable:$true] %s258
          %264 = dma.hbm_to_vmem [thread:$0]  %s1, 2048, %s259, [#allocation6], 128, 128, 8
        $region20: #{tpu_custom_call.1} parent=11 // pred_fallthru
          _
        // Predicated region
        $region21: #{tpu_custom_call.1} parent=11 // pred_check
          %p265 = pneg %p102
        $region22: #{tpu_custom_call.1} parent=11 // pred_check_branch
          %267 = sbr.rel (%p265) target = $region24
        $region23: #{tpu_custom_call.1} parent=11 // pred_region
          %s269 = ssub.s32 16, 16
          %270 = vsyncadd [#allocation6], %s269
          %s272 = sshll.u32 [#allocation7], 4
          %s273 = int_to_ptr.vmem [resolvable:$true] %s272
          %275 = dma.hbm_to_vmem [thread:$0]  %s2, 16, %s273, [#allocation6]
        $region24: #{tpu_custom_call.1} parent=11 // pred_fallthru
          _
        // Predicated region
        $region25: #{tpu_custom_call.1} parent=11 // pred_check
          %p276 = pneg %p123
        $region26: #{tpu_custom_call.1} parent=11 // pred_check_branch
          %278 = sbr.rel (%p276) target = $region28
        $region27: #{tpu_custom_call.1} parent=11 // pred_region
          %s280 = ssub.s32 4096, 4096
          %281 = vsyncadd [#allocation9], %s280
          %s282 = sshll.u32 [#allocation8], 4
          %s283 = int_to_ptr.vmem [resolvable:$true] %s282
          %288 = dma.hbm_to_vmem [thread:$0]  %s3, 4096, %s283, [#allocation9], 256, 256, 16
        $region28: #{tpu_custom_call.1} parent=11 // pred_fallthru
          _
        // Predicated region
        $region29: #{tpu_custom_call.1} parent=11 // pred_check
          %p289 = pneg %p144
        $region30: #{tpu_custom_call.1} parent=11 // pred_check_branch
          %291 = sbr.rel (%p289) target = $region32
        $region31: #{tpu_custom_call.1} parent=11 // pred_region
          %s293 = ssub.s32 32, 32
          %294 = vsyncadd [#allocation9], %s293
          %s296 = sshll.u32 [#allocation10], 4
          %s297 = int_to_ptr.vmem [resolvable:$true] %s296
          %299 = dma.hbm_to_vmem [thread:$0]  %s4, 32, %s297, [#allocation9]
        $region32: #{tpu_custom_call.1} parent=11 // pred_fallthru
          _
      $region12: #{tpu_custom_call.1} parent=5 // pred_fallthru
        _
      %p300 = scmp.lt.s32.totalorder %s22, 4
      // Predicated region
      $region33: #{tpu_custom_call.1} parent=5 // pred_check
        %p301 = pneg %p300
      $region34: #{tpu_custom_call.1} parent=5 // pred_check_branch
        %303 = sbr.rel (%p301) target = $region36
      $region35: #{tpu_custom_call.1} parent=5 // pred_region
        // Predicated region
        $region37: #{tpu_custom_call.1} parent=35 // pred_check
          %p304 = pneg %p164
        $region38: #{tpu_custom_call.1} parent=35 // pred_check_branch
          %306 = sbr.rel (%p304) target = $region40
        $region39: #{tpu_custom_call.1} parent=35 // pred_region
          %s307 = sand.u32 %s22, 1
          %s308 = scalar_lea.sflag [#allocation12], %s307
          %s309 = sand.u32 %s154, 1
          %s310 = smul.addr %s309, 3072
          %s311 = scalar_lea.vmem [#allocation11], %s310
          %s312 = smul.u32 24, %s29
          %s314 = ssub.s32 49152, 49152
          %315 = vsyncadd %s308, %s314
          %s316 = smul.addr %s312, 64
          %s317 = scalar_lea.hbm %s5, %s316
          %s318 = sshll.u32 %s311, 4
          %s319 = int_to_ptr.vmem [resolvable:$true] %s318
          %324 = dma.hbm_to_vmem [thread:$0]  %s317, 49152, %s319, %s308, 6144, 1536, 96
        $region40: #{tpu_custom_call.1} parent=35 // pred_fallthru
          _
        // Predicated region
        $region41: #{tpu_custom_call.1} parent=35 // pred_check
          %p325 = pneg %p190
        $region42: #{tpu_custom_call.1} parent=35 // pred_check_branch
          %327 = sbr.rel (%p325) target = $region44
        $region43: #{tpu_custom_call.1} parent=35 // pred_region
          %s328 = sand.u32 %s22, 1
          %s329 = scalar_lea.sflag [#allocation12], %s328
          %s330 = sand.u32 %s180, 1
          %s331 = smul.addr %s330, 24
          %s332 = scalar_lea.vmem [#allocation13], %s331
          %s333 = smul.u32 24, %s29
          %s335 = ssub.s32 384, 384
          %336 = vsyncadd %s329, %s335
          %s337 = smul.addr %s333, 16
          %s338 = scalar_lea.hbm %s6, %s337
          %s340 = sshll.u32 %s332, 4
          %s341 = int_to_ptr.vmem [resolvable:$true] %s340
          %343 = dma.hbm_to_vmem [thread:$0]  %s338, 384, %s341, %s329
        $region44: #{tpu_custom_call.1} parent=35 // pred_fallthru
          _
      $region36: #{tpu_custom_call.1} parent=5 // pred_fallthru
        _
      %p344 = scmp.le.s32.totalorder 1, %s22
      %p345 = scmp.lt.s32.totalorder %s22, 5
      %p346 = pnand %p344, %p345
      %p347 = pneg %p346
      // Predicated region
      $region45: #{tpu_custom_call.1} parent=5 // pred_check
        _
      $region46: #{tpu_custom_call.1} parent=5 // pred_check_branch
        %349 = sbr.rel (%p346) target = $region48
      $region47: #{tpu_custom_call.1} parent=5 // pred_region
        %s350 = ssub.s32 %s22, 1
        // Predicated region
        $region49: #{tpu_custom_call.1} parent=47 // pred_check
          %p351 = pneg %p60
        $region50: #{tpu_custom_call.1} parent=47 // pred_check_branch
          %353 = sbr.rel (%p351) target = $region52
        $region51: #{tpu_custom_call.1} parent=47 // pred_region
          %354 = dma.done [#allocation3], 128
        $region52: #{tpu_custom_call.1} parent=47 // pred_fallthru
          _
        // Predicated region
        $region53: #{tpu_custom_call.1} parent=47 // pred_check
          %p355 = pneg %p81
        $region54: #{tpu_custom_call.1} parent=47 // pred_check_branch
          %357 = sbr.rel (%p355) target = $region56
        $region55: #{tpu_custom_call.1} parent=47 // pred_region
          %358 = dma.done [#allocation6], 2048
        $region56: #{tpu_custom_call.1} parent=47 // pred_fallthru
          _
        // Predicated region
        $region57: #{tpu_custom_call.1} parent=47 // pred_check
          %p359 = pneg %p102
        $region58: #{tpu_custom_call.1} parent=47 // pred_check_branch
          %361 = sbr.rel (%p359) target = $region60
        $region59: #{tpu_custom_call.1} parent=47 // pred_region
          %362 = dma.done [#allocation6], 16
        $region60: #{tpu_custom_call.1} parent=47 // pred_fallthru
          _
        // Predicated region
        $region61: #{tpu_custom_call.1} parent=47 // pred_check
          %p363 = pneg %p123
        $region62: #{tpu_custom_call.1} parent=47 // pred_check_branch
          %365 = sbr.rel (%p363) target = $region64
        $region63: #{tpu_custom_call.1} parent=47 // pred_region
          %366 = dma.done [#allocation9], 4096
        $region64: #{tpu_custom_call.1} parent=47 // pred_fallthru
          _
        // Predicated region
        $region65: #{tpu_custom_call.1} parent=47 // pred_check
          %p367 = pneg %p144
        $region66: #{tpu_custom_call.1} parent=47 // pred_check_branch
          %369 = sbr.rel (%p367) target = $region68
        $region67: #{tpu_custom_call.1} parent=47 // pred_region
          %370 = dma.done [#allocation9], 32
        $region68: #{tpu_custom_call.1} parent=47 // pred_fallthru
          _
        %s371 = sand.u32 %s27, 1
        %s372 = scalar_lea.sflag [#allocation12], %s371
        %s373 = sand.u32 %s157, 1
        %s374 = smul.addr %s373, 3072
        %s375 = scalar_lea.vmem [#allocation11], %s374
        // Predicated region
        $region69: #{tpu_custom_call.1} parent=47 // pred_check
          %p376 = pneg %p170
        $region70: #{tpu_custom_call.1} parent=47 // pred_check_branch
          %378 = sbr.rel (%p376) target = $region72
        $region71: #{tpu_custom_call.1} parent=47 // pred_region
          %379 = dma.done %s372, 49152
        $region72: #{tpu_custom_call.1} parent=47 // pred_fallthru
          _
        %s380 = sand.u32 %s27, 1
        %s381 = scalar_lea.sflag [#allocation12], %s380
        %s382 = sand.u32 %s183, 1
        %s383 = smul.addr %s382, 24
        %s384 = scalar_lea.vmem [#allocation13], %s383
        // Predicated region
        $region73: #{tpu_custom_call.1} parent=47 // pred_check
          %p385 = pneg %p196
        $region74: #{tpu_custom_call.1} parent=47 // pred_check_branch
          %387 = sbr.rel (%p385) target = $region76
        $region75: #{tpu_custom_call.1} parent=47 // pred_region
          %388 = dma.done %s381, 384
        $region76: #{tpu_custom_call.1} parent=47 // pred_fallthru
          _
        %p389 = pneg %p60
        %p390 = pneg %p57
        %p391 = pneg %p81
        %p392 = pneg %p78
        %p393 = pneg %p102
        %p394 = pneg %p99
        %p395 = pneg %p123
        %p396 = pneg %p120
        %p397 = pneg %p144
        %p398 = pneg %p141
        %s399 = sand.u32 %s27, 1
        %s400 = scalar_lea.sflag [#allocation12], %s399
        %s401 = sand.u32 %s157, 1
        %s402 = smul.addr %s401, 3072
        %s403 = scalar_lea.vmem [#allocation11], %s402
        %p404 = pneg %p170
        %p405 = pneg %p167
        %s406 = sand.u32 %s27, 1
        %s407 = scalar_lea.sflag [#allocation12], %s406
        %s408 = sand.u32 %s183, 1
        %s409 = smul.addr %s408, 24
        %s410 = scalar_lea.vmem [#allocation13], %s409
        %p411 = pneg %p196
        %p412 = pneg %p193
        %p413 = pneg %p224
        %p414 = pneg %p221
        %s415 = sand.u32 %s211, 1
        %s416 = scalar_lea.sflag [#allocation4], %s415
        %s417 = sand.u32 %s211, 1
        %s418 = smul.addr %s417, 192
        %s419 = scalar_lea.vmem [#allocation14], %s418
        %s420 = smul.u32 24, %s31
        %s421 = smul.u32 24, %s31
        %s422 = smul.u32 24, %s31
        %v423 = vld [vmem:[#allocation2] sm:$0xff]
        %v424 = vld [vmem:[#allocation5] sm:$0xff]
        %v425 = vld [vmem:[#allocation5 + $0x8] sm:$0xff]
        %v426 = vld [vmem:[#allocation5 + $0x10] sm:$0xff]
        %v427 = vld [vmem:[#allocation5 + $0x18] sm:$0xff]
        %v428 = vld [vmem:[#allocation5 + $0x20] sm:$0xff]
        %v429 = vld [vmem:[#allocation5 + $0x28] sm:$0xff]
        %v430 = vld [vmem:[#allocation5 + $0x30] sm:$0xff]
        %v431 = vld [vmem:[#allocation5 + $0x38] sm:$0xff]
        %v432 = vld [vmem:[#allocation5 + $0x40] sm:$0xff]
        %v433 = vld [vmem:[#allocation5 + $0x48] sm:$0xff]
        %v434 = vld [vmem:[#allocation5 + $0x50] sm:$0xff]
        %v435 = vld [vmem:[#allocation5 + $0x58] sm:$0xff]
        %v436 = vld [vmem:[#allocation5 + $0x60] sm:$0xff]
        %v437 = vld [vmem:[#allocation5 + $0x68] sm:$0xff]
        %v438 = vld [vmem:[#allocation5 + $0x70] sm:$0xff]
        %v439 = vld [vmem:[#allocation5 + $0x78] sm:$0xff]
        %v440 = vld [vmem:[#allocation7] sm:$0x1]
        %v442 = vlaneseq
        %v443 = vshrl.u32 %v442, 7
        %v444 = vsub.s32 0, %v443
        %v445 = vrot.slane %v440, %v444
        %447 = vmatprep.subr.mxu0 0.0
        %448 = vmatpush1.msra.mxu0 %v424
        %449 = vmatprep.subr.mxu0 0.0
        %450 = vmatpush1.msra.mxu0 %v425
        %451 = vmatprep.subr.mxu0 0.0
        %452 = vmatpush1.msra.mxu0 %v426
        %453 = vmatprep.subr.mxu0 0.0
        %454 = vmatpush1.msra.mxu0 %v427
        %455 = vmatprep.subr.mxu0 0.0
        %456 = vmatpush1.msra.mxu0 %v428
        %457 = vmatprep.subr.mxu0 0.0
        %458 = vmatpush1.msra.mxu0 %v429
        %459 = vmatprep.subr.mxu0 0.0
        %460 = vmatpush1.msra.mxu0 %v430
        %461 = vmatprep.subr.mxu0 0.0
        %462 = vmatpush1.msra.mxu0 %v431
        %463 = vmatprep.subr.mxu0 0.0
        %464 = vmatpush1.msra.mxu0 %v432
        %465 = vmatprep.subr.mxu0 0.0
        %466 = vmatpush1.msra.mxu0 %v433
        %467 = vmatprep.subr.mxu0 0.0
        %468 = vmatpush1.msra.mxu0 %v434
        %469 = vmatprep.subr.mxu0 0.0
        %470 = vmatpush1.msra.mxu0 %v435
        %471 = vmatprep.subr.mxu0 0.0
        %472 = vmatpush1.msra.mxu0 %v436
        %473 = vmatprep.subr.mxu0 0.0
        %474 = vmatpush1.msra.mxu0 %v437
        %475 = vmatprep.subr.mxu0 0.0
        %476 = vmatpush1.msra.mxu0 %v438
        %477 = vmatprep.subr.mxu0 0.0
        %478 = vmatpush1.msra.mxu0 %v439
        %479 = vmatprep.subr.mxu0 0.0
        %480 = vmatpush1.msra.mxu0 0.0
        %481 = vmatprep.subr.mxu0 0.0
        %482 = vmatpush1.msra.mxu0 0.0
        %483 = vmatprep.subr.mxu0 0.0
        %484 = vmatpush1.msra.mxu0 0.0
        %485 = vmatprep.subr.mxu0 0.0
        %486 = vmatpush1.msra.mxu0 0.0
        %487 = vmatprep.subr.mxu0 0.0
        %488 = vmatpush1.msra.mxu0 0.0
        %489 = vmatprep.subr.mxu0 0.0
        %490 = vmatpush1.msra.mxu0 0.0
        %491 = vmatprep.subr.mxu0 0.0
        %492 = vmatpush1.msra.mxu0 0.0
        %493 = vmatprep.subr.mxu0 0.0
        %494 = vmatpush1.msra.mxu0 0.0
        %495 = vmatprep.subr.mxu0 0.0
        %496 = vmatpush1.msra.mxu0 0.0
        %497 = vmatprep.subr.mxu0 0.0
        %498 = vmatpush1.msra.mxu0 0.0
        %499 = vmatprep.subr.mxu0 0.0
        %500 = vmatpush1.msra.mxu0 0.0
        %501 = vmatprep.subr.mxu0 0.0
        %502 = vmatpush1.msra.mxu0 0.0
        %503 = vmatprep.subr.mxu0 0.0
        %504 = vmatpush1.msra.mxu0 0.0
        %505 = vmatprep.subr.mxu0 0.0
        %506 = vmatpush1.msra.mxu0 0.0
        %507 = vmatprep.subr.mxu0 0.0
        %508 = vmatpush1.msra.mxu0 0.0
        %509 = vmatprep.subr.mxu0 0.0
        %510 = vmatpush1.msra.mxu0 0.0
        %511 = vmatprep.mubr.f32.mxu0 0.0
        %512 = vmatmul.mubr.f32.gmra.mrb[0].mxu0 %v423
        %v513 = vpop.f32.mrb[0].mxu0
        %v514 = vadd.f32 %v445, %v513
        %v515 = vpop.f32.mrb[0].mxu0
        %516 = vdwg.mxu0
        %v517 = vmax.f32 %v514, 0.0
        %v518 = vld [vmem:[#allocation8] sm:$0xff]
        %v519 = vld [vmem:[#allocation8 + $0x8] sm:$0xff]
        %v520 = vld [vmem:[#allocation8 + $0x10] sm:$0xff]
        %v521 = vld [vmem:[#allocation8 + $0x18] sm:$0xff]
        %v522 = vld [vmem:[#allocation8 + $0x20] sm:$0xff]
        %v523 = vld [vmem:[#allocation8 + $0x28] sm:$0xff]
        %v524 = vld [vmem:[#allocation8 + $0x30] sm:$0xff]
        %v525 = vld [vmem:[#allocation8 + $0x38] sm:$0xff]
        %v526 = vld [vmem:[#allocation8 + $0x40] sm:$0xff]
        %v527 = vld [vmem:[#allocation8 + $0x48] sm:$0xff]
        %v528 = vld [vmem:[#allocation8 + $0x50] sm:$0xff]
        %v529 = vld [vmem:[#allocation8 + $0x58] sm:$0xff]
        %v530 = vld [vmem:[#allocation8 + $0x60] sm:$0xff]
        %v531 = vld [vmem:[#allocation8 + $0x68] sm:$0xff]
        %v532 = vld [vmem:[#allocation8 + $0x70] sm:$0xff]
        %v533 = vld [vmem:[#allocation8 + $0x78] sm:$0xff]
        %v534 = vld [vmem:[#allocation8 + $0x80] sm:$0xff]
        %v535 = vld [vmem:[#allocation8 + $0x88] sm:$0xff]
        %v536 = vld [vmem:[#allocation8 + $0x90] sm:$0xff]
        %v537 = vld [vmem:[#allocation8 + $0x98] sm:$0xff]
        %v538 = vld [vmem:[#allocation8 + $0xa0] sm:$0xff]
        %v539 = vld [vmem:[#allocation8 + $0xa8] sm:$0xff]
        %v540 = vld [vmem:[#allocation8 + $0xb0] sm:$0xff]
        %v541 = vld [vmem:[#allocation8 + $0xb8] sm:$0xff]
        %v542 = vld [vmem:[#allocation8 + $0xc0] sm:$0xff]
        %v543 = vld [vmem:[#allocation8 + $0xc8] sm:$0xff]
        %v544 = vld [vmem:[#allocation8 + $0xd0] sm:$0xff]
        %v545 = vld [vmem:[#allocation8 + $0xd8] sm:$0xff]
        %v546 = vld [vmem:[#allocation8 + $0xe0] sm:$0xff]
        %v547 = vld [vmem:[#allocation8 + $0xe8] sm:$0xff]
        %v548 = vld [vmem:[#allocation8 + $0xf0] sm:$0xff]
        %v549 = vld [vmem:[#allocation8 + $0xf8] sm:$0xff]
        %v550 = vld [vmem:[#allocation10] sm:$0x3]
        %v552 = vlaneseq
        %v553 = vshrl.u32 %v552, 7
        %v554 = vsub.s32 0, %v553
        %v555 = vrot.slane %v550, %v554
        %v556 = vlaneseq
        %v557 = vshrl.u32 %v556, 7
        %v558 = vsub.s32 1, %v557
        %v559 = vrot.slane %v550, %v558
        %562 = vmatprep.subr.mxu0 %v519
        %563 = vmatpush1.msra.mxu0 %v518
        %564 = vmatprep.subr.mxu0 %v521
        %565 = vmatpush1.msra.mxu0 %v520
        %566 = vmatprep.subr.mxu0 %v523
        %567 = vmatpush1.msra.mxu0 %v522
        %568 = vmatprep.subr.mxu0 %v525
        %569 = vmatpush1.msra.mxu0 %v524
        %570 = vmatprep.subr.mxu0 %v527
        %571 = vmatpush1.msra.mxu0 %v526
        %572 = vmatprep.subr.mxu0 %v529
        %573 = vmatpush1.msra.mxu0 %v528
        %574 = vmatprep.subr.mxu0 %v531
        %575 = vmatpush1.msra.mxu0 %v530
        %576 = vmatprep.subr.mxu0 %v533
        %577 = vmatpush1.msra.mxu0 %v532
        %578 = vmatprep.subr.mxu0 %v535
        %579 = vmatpush1.msra.mxu0 %v534
        %580 = vmatprep.subr.mxu0 %v537
        %581 = vmatpush1.msra.mxu0 %v536
        %582 = vmatprep.subr.mxu0 %v539
        %583 = vmatpush1.msra.mxu0 %v538
        %584 = vmatprep.subr.mxu0 %v541
        %585 = vmatpush1.msra.mxu0 %v540
        %586 = vmatprep.subr.mxu0 %v543
        %587 = vmatpush1.msra.mxu0 %v542
        %588 = vmatprep.subr.mxu0 %v545
        %589 = vmatpush1.msra.mxu0 %v544
        %590 = vmatprep.subr.mxu0 %v547
        %591 = vmatpush1.msra.mxu0 %v546
        %592 = vmatprep.subr.mxu0 %v549
        %593 = vmatpush1.msra.mxu0 %v548
        %594 = vmatprep.subr.mxu0 0.0
        %595 = vmatpush1.msra.mxu0 0.0
        %596 = vmatprep.subr.mxu0 0.0
        %597 = vmatpush1.msra.mxu0 0.0
        %598 = vmatprep.subr.mxu0 0.0
        %599 = vmatpush1.msra.mxu0 0.0
        %600 = vmatprep.subr.mxu0 0.0
        %601 = vmatpush1.msra.mxu0 0.0
        %602 = vmatprep.subr.mxu0 0.0
        %603 = vmatpush1.msra.mxu0 0.0
        %604 = vmatprep.subr.mxu0 0.0
        %605 = vmatpush1.msra.mxu0 0.0
        %606 = vmatprep.subr.mxu0 0.0
        %607 = vmatpush1.msra.mxu0 0.0
        %608 = vmatprep.subr.mxu0 0.0
        %609 = vmatpush1.msra.mxu0 0.0
        %610 = vmatprep.subr.mxu0 0.0
        %611 = vmatpush1.msra.mxu0 0.0
        %612 = vmatprep.subr.mxu0 0.0
        %613 = vmatpush1.msra.mxu0 0.0
        %614 = vmatprep.subr.mxu0 0.0
        %615 = vmatpush1.msra.mxu0 0.0
        %616 = vmatprep.subr.mxu0 0.0
        %617 = vmatpush1.msra.mxu0 0.0
        %618 = vmatprep.subr.mxu0 0.0
        %619 = vmatpush1.msra.mxu0 0.0
        %620 = vmatprep.subr.mxu0 0.0
        %621 = vmatpush1.msra.mxu0 0.0
        %622 = vmatprep.subr.mxu0 0.0
        %623 = vmatpush1.msra.mxu0 0.0
        %624 = vmatprep.subr.mxu0 0.0
        %625 = vmatpush1.msra.mxu0 0.0
        %626 = vmatprep.mubr.f32.mxu0 0.0
        %627 = vmatmul.mubr.f32.gmra.mrb[0].mxu0 %v517
        %v628 = vpop.f32.mrb[0].mxu0
        %v629 = vadd.f32 %v555, %v628
        %v630 = vpop.f32.mrb[0].mxu0
        %v631 = vadd.f32 %v559, %v630
        %632 = vdwg.mxu0
        %v633 = vmax.f32 %v629, 0.0
        %v634 = vmax.f32 %v631, 0.0
        %v635 = vpack.c.bf16 %v633, %v633
        %v636 = vpack.c.bf16 %v634, %v634
        %v637 = vld [vmem:[%s375] sm:$0xff]
        %v638 = vld [vmem:[%s375 + $0x8] sm:$0xff]
        %v639 = vld [vmem:[%s375 + $0x10] sm:$0xff]
        %v640 = vld [vmem:[%s375 + $0x18] sm:$0xff]
        %v641 = vld [vmem:[%s375 + $0x20] sm:$0xff]
        %v642 = vld [vmem:[%s375 + $0x28] sm:$0xff]
        %v643 = vld [vmem:[%s375 + $0x30] sm:$0xff]
        %v644 = vld [vmem:[%s375 + $0x38] sm:$0xff]
        %v645 = vld [vmem:[%s375 + $0x40] sm:$0xff]
        %v646 = vld [vmem:[%s375 + $0x48] sm:$0xff]
        %v647 = vld [vmem:[%s375 + $0x50] sm:$0xff]
        %v648 = vld [vmem:[%s375 + $0x58] sm:$0xff]
        %v649 = vld [vmem:[%s375 + $0x60] sm:$0xff]
        %v650 = vld [vmem:[%s375 + $0x68] sm:$0xff]
        %v651 = vld [vmem:[%s375 + $0x70] sm:$0xff]
        %v652 = vld [vmem:[%s375 + $0x78] sm:$0xff]
        %v653 = vld [vmem:[%s375 + $0x80] sm:$0xff]
        %v654 = vld [vmem:[%s375 + $0x88] sm:$0xff]
        %v655 = vld [vmem:[%s375 + $0x90] sm:$0xff]
        %v656 = vld [vmem:[%s375 + $0x98] sm:$0xff]
        %v657 = vld [vmem:[%s375 + $0xa0] sm:$0xff]
        %v658 = vld [vmem:[%s375 + $0xa8] sm:$0xff]
        %v659 = vld [vmem:[%s375 + $0xb0] sm:$0xff]
        %v660 = vld [vmem:[%s375 + $0xb8] sm:$0xff]
        %v661 = vld [vmem:[%s375 + $0xc0] sm:$0xff]
        %v662 = vld [vmem:[%s375 + $0xc8] sm:$0xff]
        %v663 = vld [vmem:[%s375 + $0xd0] sm:$0xff]
        %v664 = vld [vmem:[%s375 + $0xd8] sm:$0xff]
        %v665 = vld [vmem:[%s375 + $0xe0] sm:$0xff]
        %v666 = vld [vmem:[%s375 + $0xe8] sm:$0xff]
        %v667 = vld [vmem:[%s375 + $0xf0] sm:$0xff]
        %v668 = vld [vmem:[%s375 + $0xf8] sm:$0xff]
        %v669 = vld [vmem:[%s375 + $0x100] sm:$0xff]
        %v670 = vld [vmem:[%s375 + $0x108] sm:$0xff]
        %v671 = vld [vmem:[%s375 + $0x110] sm:$0xff]
        %v672 = vld [vmem:[%s375 + $0x118] sm:$0xff]
        %v673 = vld [vmem:[%s375 + $0x120] sm:$0xff]
        %v674 = vld [vmem:[%s375 + $0x128] sm:$0xff]
        %v675 = vld [vmem:[%s375 + $0x130] sm:$0xff]
        %v676 = vld [vmem:[%s375 + $0x138] sm:$0xff]
        %v677 = vld [vmem:[%s375 + $0x140] sm:$0xff]
        %v678 = vld [vmem:[%s375 + $0x148] sm:$0xff]
        %v679 = vld [vmem:[%s375 + $0x150] sm:$0xff]
        %v680 = vld [vmem:[%s375 + $0x158] sm:$0xff]
        %v681 = vld [vmem:[%s375 + $0x160] sm:$0xff]
        %v682 = vld [vmem:[%s375 + $0x168] sm:$0xff]
        %v683 = vld [vmem:[%s375 + $0x170] sm:$0xff]
        %v684 = vld [vmem:[%s375 + $0x178] sm:$0xff]
        %v685 = vld [vmem:[%s375 + $0x180] sm:$0xff]
        %v686 = vld [vmem:[%s375 + $0x188] sm:$0xff]
        %v687 = vld [vmem:[%s375 + $0x190] sm:$0xff]
        %v688 = vld [vmem:[%s375 + $0x198] sm:$0xff]
        %v689 = vld [vmem:[%s375 + $0x1a0] sm:$0xff]
        %v690 = vld [vmem:[%s375 + $0x1a8] sm:$0xff]
        %v691 = vld [vmem:[%s375 + $0x1b0] sm:$0xff]
        %v692 = vld [vmem:[%s375 + $0x1b8] sm:$0xff]
        %v693 = vld [vmem:[%s375 + $0x1c0] sm:$0xff]
        %v694 = vld [vmem:[%s375 + $0x1c8] sm:$0xff]
        %v695 = vld [vmem:[%s375 + $0x1d0] sm:$0xff]
        %v696 = vld [vmem:[%s375 + $0x1d8] sm:$0xff]
        %v697 = vld [vmem:[%s375 + $0x1e0] sm:$0xff]
        %v698 = vld [vmem:[%s375 + $0x1e8] sm:$0xff]
        %v699 = vld [vmem:[%s375 + $0x1f0] sm:$0xff]
        %v700 = vld [vmem:[%s375 + $0x1f8] sm:$0xff]
        %v701 = vld [vmem:[%s375 + $0x200] sm:$0xff]
        %v702 = vld [vmem:[%s375 + $0x208] sm:$0xff]
        %v703 = vld [vmem:[%s375 + $0x210] sm:$0xff]
        %v704 = vld [vmem:[%s375 + $0x218] sm:$0xff]
        %v705 = vld [vmem:[%s375 + $0x220] sm:$0xff]
        %v706 = vld [vmem:[%s375 + $0x228] sm:$0xff]
        %v707 = vld [vmem:[%s375 + $0x230] sm:$0xff]
        %v708 = vld [vmem:[%s375 + $0x238] sm:$0xff]
        %v709 = vld [vmem:[%s375 + $0x240] sm:$0xff]
        %v710 = vld [vmem:[%s375 + $0x248] sm:$0xff]
        %v711 = vld [vmem:[%s375 + $0x250] sm:$0xff]
        %v712 = vld [vmem:[%s375 + $0x258] sm:$0xff]
        %v713 = vld [vmem:[%s375 + $0x260] sm:$0xff]
        %v714 = vld [vmem:[%s375 + $0x268] sm:$0xff]
        %v715 = vld [vmem:[%s375 + $0x270] sm:$0xff]
        %v716 = vld [vmem:[%s375 + $0x278] sm:$0xff]
        %v717 = vld [vmem:[%s375 + $0x280] sm:$0xff]
        %v718 = vld [vmem:[%s375 + $0x288] sm:$0xff]
        %v719 = vld [vmem:[%s375 + $0x290] sm:$0xff]
        %v720 = vld [vmem:[%s375 + $0x298] sm:$0xff]
        %v721 = vld [vmem:[%s375 + $0x2a0] sm:$0xff]
        %v722 = vld [vmem:[%s375 + $0x2a8] sm:$0xff]
        %v723 = vld [vmem:[%s375 + $0x2b0] sm:$0xff]
        %v724 = vld [vmem:[%s375 + $0x2b8] sm:$0xff]
        %v725 = vld [vmem:[%s375 + $0x2c0] sm:$0xff]
        %v726 = vld [vmem:[%s375 + $0x2c8] sm:$0xff]
        %v727 = vld [vmem:[%s375 + $0x2d0] sm:$0xff]
        %v728 = vld [vmem:[%s375 + $0x2d8] sm:$0xff]
        %v729 = vld [vmem:[%s375 + $0x2e0] sm:$0xff]
        %v730 = vld [vmem:[%s375 + $0x2e8] sm:$0xff]
        %v731 = vld [vmem:[%s375 + $0x2f0] sm:$0xff]
        %v732 = vld [vmem:[%s375 + $0x2f8] sm:$0xff]
        %v733 = vld [vmem:[%s375 + $0x300] sm:$0xff]
        %v734 = vld [vmem:[%s375 + $0x308] sm:$0xff]
        %v735 = vld [vmem:[%s375 + $0x310] sm:$0xff]
        %v736 = vld [vmem:[%s375 + $0x318] sm:$0xff]
        %v737 = vld [vmem:[%s375 + $0x320] sm:$0xff]
        %v738 = vld [vmem:[%s375 + $0x328] sm:$0xff]
        %v739 = vld [vmem:[%s375 + $0x330] sm:$0xff]
        %v740 = vld [vmem:[%s375 + $0x338] sm:$0xff]
        %v741 = vld [vmem:[%s375 + $0x340] sm:$0xff]
        %v742 = vld [vmem:[%s375 + $0x348] sm:$0xff]
        %v743 = vld [vmem:[%s375 + $0x350] sm:$0xff]
        %v744 = vld [vmem:[%s375 + $0x358] sm:$0xff]
        %v745 = vld [vmem:[%s375 + $0x360] sm:$0xff]
        %v746 = vld [vmem:[%s375 + $0x368] sm:$0xff]
        %v747 = vld [vmem:[%s375 + $0x370] sm:$0xff]
        %v748 = vld [vmem:[%s375 + $0x378] sm:$0xff]
        %v749 = vld [vmem:[%s375 + $0x380] sm:$0xff]
        %v750 = vld [vmem:[%s375 + $0x388] sm:$0xff]
        %v751 = vld [vmem:[%s375 + $0x390] sm:$0xff]
        %v752 = vld [vmem:[%s375 + $0x398] sm:$0xff]
        %v753 = vld [vmem:[%s375 + $0x3a0] sm:$0xff]
        %v754 = vld [vmem:[%s375 + $0x3a8] sm:$0xff]
        %v755 = vld [vmem:[%s375 + $0x3b0] sm:$0xff]
        %v756 = vld [vmem:[%s375 + $0x3b8] sm:$0xff]
        %v757 = vld [vmem:[%s375 + $0x3c0] sm:$0xff]
        %v758 = vld [vmem:[%s375 + $0x3c8] sm:$0xff]
        %v759 = vld [vmem:[%s375 + $0x3d0] sm:$0xff]
        %v760 = vld [vmem:[%s375 + $0x3d8] sm:$0xff]
        %v761 = vld [vmem:[%s375 + $0x3e0] sm:$0xff]
        %v762 = vld [vmem:[%s375 + $0x3e8] sm:$0xff]
        %v763 = vld [vmem:[%s375 + $0x3f0] sm:$0xff]
        %v764 = vld [vmem:[%s375 + $0x3f8] sm:$0xff]
        %v765 = vld [vmem:[%s375 + $0x400] sm:$0xff]
        %v766 = vld [vmem:[%s375 + $0x408] sm:$0xff]
        %v767 = vld [vmem:[%s375 + $0x410] sm:$0xff]
        %v768 = vld [vmem:[%s375 + $0x418] sm:$0xff]
        %v769 = vld [vmem:[%s375 + $0x420] sm:$0xff]
        %v770 = vld [vmem:[%s375 + $0x428] sm:$0xff]
        %v771 = vld [vmem:[%s375 + $0x430] sm:$0xff]
        %v772 = vld [vmem:[%s375 + $0x438] sm:$0xff]
        %v773 = vld [vmem:[%s375 + $0x440] sm:$0xff]
        %v774 = vld [vmem:[%s375 + $0x448] sm:$0xff]
        %v775 = vld [vmem:[%s375 + $0x450] sm:$0xff]
        %v776 = vld [vmem:[%s375 + $0x458] sm:$0xff]
        %v777 = vld [vmem:[%s375 + $0x460] sm:$0xff]
        %v778 = vld [vmem:[%s375 + $0x468] sm:$0xff]
        %v779 = vld [vmem:[%s375 + $0x470] sm:$0xff]
        %v780 = vld [vmem:[%s375 + $0x478] sm:$0xff]
        %v781 = vld [vmem:[%s375 + $0x480] sm:$0xff]
        %v782 = vld [vmem:[%s375 + $0x488] sm:$0xff]
        %v783 = vld [vmem:[%s375 + $0x490] sm:$0xff]
        %v784 = vld [vmem:[%s375 + $0x498] sm:$0xff]
        %v785 = vld [vmem:[%s375 + $0x4a0] sm:$0xff]
        %v786 = vld [vmem:[%s375 + $0x4a8] sm:$0xff]
        %v787 = vld [vmem:[%s375 + $0x4b0] sm:$0xff]
        %v788 = vld [vmem:[%s375 + $0x4b8] sm:$0xff]
        %v789 = vld [vmem:[%s375 + $0x4c0] sm:$0xff]
        %v790 = vld [vmem:[%s375 + $0x4c8] sm:$0xff]
        %v791 = vld [vmem:[%s375 + $0x4d0] sm:$0xff]
        %v792 = vld [vmem:[%s375 + $0x4d8] sm:$0xff]
        %v793 = vld [vmem:[%s375 + $0x4e0] sm:$0xff]
        %v794 = vld [vmem:[%s375 + $0x4e8] sm:$0xff]
        %v795 = vld [vmem:[%s375 + $0x4f0] sm:$0xff]
        %v796 = vld [vmem:[%s375 + $0x4f8] sm:$0xff]
        %v797 = vld [vmem:[%s375 + $0x500] sm:$0xff]
        %v798 = vld [vmem:[%s375 + $0x508] sm:$0xff]
        %v799 = vld [vmem:[%s375 + $0x510] sm:$0xff]
        %v800 = vld [vmem:[%s375 + $0x518] sm:$0xff]
        %v801 = vld [vmem:[%s375 + $0x520] sm:$0xff]
        %v802 = vld [vmem:[%s375 + $0x528] sm:$0xff]
        %v803 = vld [vmem:[%s375 + $0x530] sm:$0xff]
        %v804 = vld [vmem:[%s375 + $0x538] sm:$0xff]
        %v805 = vld [vmem:[%s375 + $0x540] sm:$0xff]
        %v806 = vld [vmem:[%s375 + $0x548] sm:$0xff]
        %v807 = vld [vmem:[%s375 + $0x550] sm:$0xff]
        %v808 = vld [vmem:[%s375 + $0x558] sm:$0xff]
        %v809 = vld [vmem:[%s375 + $0x560] sm:$0xff]
        %v810 = vld [vmem:[%s375 + $0x568] sm:$0xff]
        %v811 = vld [vmem:[%s375 + $0x570] sm:$0xff]
        %v812 = vld [vmem:[%s375 + $0x578] sm:$0xff]
        %v813 = vld [vmem:[%s375 + $0x580] sm:$0xff]
        %v814 = vld [vmem:[%s375 + $0x588] sm:$0xff]
        %v815 = vld [vmem:[%s375 + $0x590] sm:$0xff]
        %v816 = vld [vmem:[%s375 + $0x598] sm:$0xff]
        %v817 = vld [vmem:[%s375 + $0x5a0] sm:$0xff]
        %v818 = vld [vmem:[%s375 + $0x5a8] sm:$0xff]
        %v819 = vld [vmem:[%s375 + $0x5b0] sm:$0xff]
        %v820 = vld [vmem:[%s375 + $0x5b8] sm:$0xff]
        %v821 = vld [vmem:[%s375 + $0x5c0] sm:$0xff]
        %v822 = vld [vmem:[%s375 + $0x5c8] sm:$0xff]
        %v823 = vld [vmem:[%s375 + $0x5d0] sm:$0xff]
        %v824 = vld [vmem:[%s375 + $0x5d8] sm:$0xff]
        %v825 = vld [vmem:[%s375 + $0x5e0] sm:$0xff]
        %v826 = vld [vmem:[%s375 + $0x5e8] sm:$0xff]
        %v827 = vld [vmem:[%s375 + $0x5f0] sm:$0xff]
        %v828 = vld [vmem:[%s375 + $0x5f8] sm:$0xff]
        %v829 = vld [vmem:[%s375 + $0x600] sm:$0xff]
        %v830 = vld [vmem:[%s375 + $0x608] sm:$0xff]
        %v831 = vld [vmem:[%s375 + $0x610] sm:$0xff]
        %v832 = vld [vmem:[%s375 + $0x618] sm:$0xff]
        %v833 = vld [vmem:[%s375 + $0x620] sm:$0xff]
        %v834 = vld [vmem:[%s375 + $0x628] sm:$0xff]
        %v835 = vld [vmem:[%s375 + $0x630] sm:$0xff]
        %v836 = vld [vmem:[%s375 + $0x638] sm:$0xff]
        %v837 = vld [vmem:[%s375 + $0x640] sm:$0xff]
        %v838 = vld [vmem:[%s375 + $0x648] sm:$0xff]
        %v839 = vld [vmem:[%s375 + $0x650] sm:$0xff]
        %v840 = vld [vmem:[%s375 + $0x658] sm:$0xff]
        %v841 = vld [vmem:[%s375 + $0x660] sm:$0xff]
        %v842 = vld [vmem:[%s375 + $0x668] sm:$0xff]
        %v843 = vld [vmem:[%s375 + $0x670] sm:$0xff]
        %v844 = vld [vmem:[%s375 + $0x678] sm:$0xff]
        %v845 = vld [vmem:[%s375 + $0x680] sm:$0xff]
        %v846 = vld [vmem:[%s375 + $0x688] sm:$0xff]
        %v847 = vld [vmem:[%s375 + $0x690] sm:$0xff]
        %v848 = vld [vmem:[%s375 + $0x698] sm:$0xff]
        %v849 = vld [vmem:[%s375 + $0x6a0] sm:$0xff]
        %v850 = vld [vmem:[%s375 + $0x6a8] sm:$0xff]
        %v851 = vld [vmem:[%s375 + $0x6b0] sm:$0xff]
        %v852 = vld [vmem:[%s375 + $0x6b8] sm:$0xff]
        %v853 = vld [vmem:[%s375 + $0x6c0] sm:$0xff]
        %v854 = vld [vmem:[%s375 + $0x6c8] sm:$0xff]
        %v855 = vld [vmem:[%s375 + $0x6d0] sm:$0xff]
        %v856 = vld [vmem:[%s375 + $0x6d8] sm:$0xff]
        %v857 = vld [vmem:[%s375 + $0x6e0] sm:$0xff]
        %v858 = vld [vmem:[%s375 + $0x6e8] sm:$0xff]
        %v859 = vld [vmem:[%s375 + $0x6f0] sm:$0xff]
        %v860 = vld [vmem:[%s375 + $0x6f8] sm:$0xff]
        %v861 = vld [vmem:[%s375 + $0x700] sm:$0xff]
        %v862 = vld [vmem:[%s375 + $0x708] sm:$0xff]
        %v863 = vld [vmem:[%s375 + $0x710] sm:$0xff]
        %v864 = vld [vmem:[%s375 + $0x718] sm:$0xff]
        %v865 = vld [vmem:[%s375 + $0x720] sm:$0xff]
        %v866 = vld [vmem:[%s375 + $0x728] sm:$0xff]
        %v867 = vld [vmem:[%s375 + $0x730] sm:$0xff]
        %v868 = vld [vmem:[%s375 + $0x738] sm:$0xff]
        %v869 = vld [vmem:[%s375 + $0x740] sm:$0xff]
        %v870 = vld [vmem:[%s375 + $0x748] sm:$0xff]
        %v871 = vld [vmem:[%s375 + $0x750] sm:$0xff]
        %v872 = vld [vmem:[%s375 + $0x758] sm:$0xff]
        %v873 = vld [vmem:[%s375 + $0x760] sm:$0xff]
        %v874 = vld [vmem:[%s375 + $0x768] sm:$0xff]
        %v875 = vld [vmem:[%s375 + $0x770] sm:$0xff]
        %v876 = vld [vmem:[%s375 + $0x778] sm:$0xff]
        %v877 = vld [vmem:[%s375 + $0x780] sm:$0xff]
        %v878 = vld [vmem:[%s375 + $0x788] sm:$0xff]
        %v879 = vld [vmem:[%s375 + $0x790] sm:$0xff]
        %v880 = vld [vmem:[%s375 + $0x798] sm:$0xff]
        %v881 = vld [vmem:[%s375 + $0x7a0] sm:$0xff]
        %v882 = vld [vmem:[%s375 + $0x7a8] sm:$0xff]
        %v883 = vld [vmem:[%s375 + $0x7b0] sm:$0xff]
        %v884 = vld [vmem:[%s375 + $0x7b8] sm:$0xff]
        %v885 = vld [vmem:[%s375 + $0x7c0] sm:$0xff]
        %v886 = vld [vmem:[%s375 + $0x7c8] sm:$0xff]
        %v887 = vld [vmem:[%s375 + $0x7d0] sm:$0xff]
        %v888 = vld [vmem:[%s375 + $0x7d8] sm:$0xff]
        %v889 = vld [vmem:[%s375 + $0x7e0] sm:$0xff]
        %v890 = vld [vmem:[%s375 + $0x7e8] sm:$0xff]
        %v891 = vld [vmem:[%s375 + $0x7f0] sm:$0xff]
        %v892 = vld [vmem:[%s375 + $0x7f8] sm:$0xff]
        %v893 = vld [vmem:[%s375 + $0x800] sm:$0xff]
        %v894 = vld [vmem:[%s375 + $0x808] sm:$0xff]
        %v895 = vld [vmem:[%s375 + $0x810] sm:$0xff]
        %v896 = vld [vmem:[%s375 + $0x818] sm:$0xff]
        %v897 = vld [vmem:[%s375 + $0x820] sm:$0xff]
        %v898 = vld [vmem:[%s375 + $0x828] sm:$0xff]
        %v899 = vld [vmem:[%s375 + $0x830] sm:$0xff]
        %v900 = vld [vmem:[%s375 + $0x838] sm:$0xff]
        %v901 = vld [vmem:[%s375 + $0x840] sm:$0xff]
        %v902 = vld [vmem:[%s375 + $0x848] sm:$0xff]
        %v903 = vld [vmem:[%s375 + $0x850] sm:$0xff]
        %v904 = vld [vmem:[%s375 + $0x858] sm:$0xff]
        %v905 = vld [vmem:[%s375 + $0x860] sm:$0xff]
        %v906 = vld [vmem:[%s375 + $0x868] sm:$0xff]
        %v907 = vld [vmem:[%s375 + $0x870] sm:$0xff]
        %v908 = vld [vmem:[%s375 + $0x878] sm:$0xff]
        %v909 = vld [vmem:[%s375 + $0x880] sm:$0xff]
        %v910 = vld [vmem:[%s375 + $0x888] sm:$0xff]
        %v911 = vld [vmem:[%s375 + $0x890] sm:$0xff]
        %v912 = vld [vmem:[%s375 + $0x898] sm:$0xff]
        %v913 = vld [vmem:[%s375 + $0x8a0] sm:$0xff]
        %v914 = vld [vmem:[%s375 + $0x8a8] sm:$0xff]
        %v915 = vld [vmem:[%s375 + $0x8b0] sm:$0xff]
        %v916 = vld [vmem:[%s375 + $0x8b8] sm:$0xff]
        %v917 = vld [vmem:[%s375 + $0x8c0] sm:$0xff]
        %v918 = vld [vmem:[%s375 + $0x8c8] sm:$0xff]
        %v919 = vld [vmem:[%s375 + $0x8d0] sm:$0xff]
        %v920 = vld [vmem:[%s375 + $0x8d8] sm:$0xff]
        %v921 = vld [vmem:[%s375 + $0x8e0] sm:$0xff]
        %v922 = vld [vmem:[%s375 + $0x8e8] sm:$0xff]
        %v923 = vld [vmem:[%s375 + $0x8f0] sm:$0xff]
        %v924 = vld [vmem:[%s375 + $0x8f8] sm:$0xff]
        %v925 = vld [vmem:[%s375 + $0x900] sm:$0xff]
        %v926 = vld [vmem:[%s375 + $0x908] sm:$0xff]
        %v927 = vld [vmem:[%s375 + $0x910] sm:$0xff]
        %v928 = vld [vmem:[%s375 + $0x918] sm:$0xff]
        %v929 = vld [vmem:[%s375 + $0x920] sm:$0xff]
        %v930 = vld [vmem:[%s375 + $0x928] sm:$0xff]
        %v931 = vld [vmem:[%s375 + $0x930] sm:$0xff]
        %v932 = vld [vmem:[%s375 + $0x938] sm:$0xff]
        %v933 = vld [vmem:[%s375 + $0x940] sm:$0xff]
        %v934 = vld [vmem:[%s375 + $0x948] sm:$0xff]
        %v935 = vld [vmem:[%s375 + $0x950] sm:$0xff]
        %v936 = vld [vmem:[%s375 + $0x958] sm:$0xff]
        %v937 = vld [vmem:[%s375 + $0x960] sm:$0xff]
        %v938 = vld [vmem:[%s375 + $0x968] sm:$0xff]
        %v939 = vld [vmem:[%s375 + $0x970] sm:$0xff]
        %v940 = vld [vmem:[%s375 + $0x978] sm:$0xff]
        %v941 = vld [vmem:[%s375 + $0x980] sm:$0xff]
        %v942 = vld [vmem:[%s375 + $0x988] sm:$0xff]
        %v943 = vld [vmem:[%s375 + $0x990] sm:$0xff]
        %v944 = vld [vmem:[%s375 + $0x998] sm:$0xff]
        %v945 = vld [vmem:[%s375 + $0x9a0] sm:$0xff]
        %v946 = vld [vmem:[%s375 + $0x9a8] sm:$0xff]
        %v947 = vld [vmem:[%s375 + $0x9b0] sm:$0xff]
        %v948 = vld [vmem:[%s375 + $0x9b8] sm:$0xff]
        %v949 = vld [vmem:[%s375 + $0x9c0] sm:$0xff]
        %v950 = vld [vmem:[%s375 + $0x9c8] sm:$0xff]
        %v951 = vld [vmem:[%s375 + $0x9d0] sm:$0xff]
        %v952 = vld [vmem:[%s375 + $0x9d8] sm:$0xff]
        %v953 = vld [vmem:[%s375 + $0x9e0] sm:$0xff]
        %v954 = vld [vmem:[%s375 + $0x9e8] sm:$0xff]
        %v955 = vld [vmem:[%s375 + $0x9f0] sm:$0xff]
        %v956 = vld [vmem:[%s375 + $0x9f8] sm:$0xff]
        %v957 = vld [vmem:[%s375 + $0xa00] sm:$0xff]
        %v958 = vld [vmem:[%s375 + $0xa08] sm:$0xff]
        %v959 = vld [vmem:[%s375 + $0xa10] sm:$0xff]
        %v960 = vld [vmem:[%s375 + $0xa18] sm:$0xff]
        %v961 = vld [vmem:[%s375 + $0xa20] sm:$0xff]
        %v962 = vld [vmem:[%s375 + $0xa28] sm:$0xff]
        %v963 = vld [vmem:[%s375 + $0xa30] sm:$0xff]
        %v964 = vld [vmem:[%s375 + $0xa38] sm:$0xff]
        %v965 = vld [vmem:[%s375 + $0xa40] sm:$0xff]
        %v966 = vld [vmem:[%s375 + $0xa48] sm:$0xff]
        %v967 = vld [vmem:[%s375 + $0xa50] sm:$0xff]
        %v968 = vld [vmem:[%s375 + $0xa58] sm:$0xff]
        %v969 = vld [vmem:[%s375 + $0xa60] sm:$0xff]
        %v970 = vld [vmem:[%s375 + $0xa68] sm:$0xff]
        %v971 = vld [vmem:[%s375 + $0xa70] sm:$0xff]
        %v972 = vld [vmem:[%s375 + $0xa78] sm:$0xff]
        %v973 = vld [vmem:[%s375 + $0xa80] sm:$0xff]
        %v974 = vld [vmem:[%s375 + $0xa88] sm:$0xff]
        %v975 = vld [vmem:[%s375 + $0xa90] sm:$0xff]
        %v976 = vld [vmem:[%s375 + $0xa98] sm:$0xff]
        %v977 = vld [vmem:[%s375 + $0xaa0] sm:$0xff]
        %v978 = vld [vmem:[%s375 + $0xaa8] sm:$0xff]
        %v979 = vld [vmem:[%s375 + $0xab0] sm:$0xff]
        %v980 = vld [vmem:[%s375 + $0xab8] sm:$0xff]
        %v981 = vld [vmem:[%s375 + $0xac0] sm:$0xff]
        %v982 = vld [vmem:[%s375 + $0xac8] sm:$0xff]
        %v983 = vld [vmem:[%s375 + $0xad0] sm:$0xff]
        %v984 = vld [vmem:[%s375 + $0xad8] sm:$0xff]
        %v985 = vld [vmem:[%s375 + $0xae0] sm:$0xff]
        %v986 = vld [vmem:[%s375 + $0xae8] sm:$0xff]
        %v987 = vld [vmem:[%s375 + $0xaf0] sm:$0xff]
        %v988 = vld [vmem:[%s375 + $0xaf8] sm:$0xff]
        %v989 = vld [vmem:[%s375 + $0xb00] sm:$0xff]
        %v990 = vld [vmem:[%s375 + $0xb08] sm:$0xff]
        %v991 = vld [vmem:[%s375 + $0xb10] sm:$0xff]
        %v992 = vld [vmem:[%s375 + $0xb18] sm:$0xff]
        %v993 = vld [vmem:[%s375 + $0xb20] sm:$0xff]
        %v994 = vld [vmem:[%s375 + $0xb28] sm:$0xff]
        %v995 = vld [vmem:[%s375 + $0xb30] sm:$0xff]
        %v996 = vld [vmem:[%s375 + $0xb38] sm:$0xff]
        %v997 = vld [vmem:[%s375 + $0xb40] sm:$0xff]
        %v998 = vld [vmem:[%s375 + $0xb48] sm:$0xff]
        %v999 = vld [vmem:[%s375 + $0xb50] sm:$0xff]
        %v1000 = vld [vmem:[%s375 + $0xb58] sm:$0xff]
        %v1001 = vld [vmem:[%s375 + $0xb60] sm:$0xff]
        %v1002 = vld [vmem:[%s375 + $0xb68] sm:$0xff]
        %v1003 = vld [vmem:[%s375 + $0xb70] sm:$0xff]
        %v1004 = vld [vmem:[%s375 + $0xb78] sm:$0xff]
        %v1005 = vld [vmem:[%s375 + $0xb80] sm:$0xff]
        %v1006 = vld [vmem:[%s375 + $0xb88] sm:$0xff]
        %v1007 = vld [vmem:[%s375 + $0xb90] sm:$0xff]
        %v1008 = vld [vmem:[%s375 + $0xb98] sm:$0xff]
        %v1009 = vld [vmem:[%s375 + $0xba0] sm:$0xff]
        %v1010 = vld [vmem:[%s375 + $0xba8] sm:$0xff]
        %v1011 = vld [vmem:[%s375 + $0xbb0] sm:$0xff]
        %v1012 = vld [vmem:[%s375 + $0xbb8] sm:$0xff]
        %v1013 = vld [vmem:[%s375 + $0xbc0] sm:$0xff]
        %v1014 = vld [vmem:[%s375 + $0xbc8] sm:$0xff]
        %v1015 = vld [vmem:[%s375 + $0xbd0] sm:$0xff]
        %v1016 = vld [vmem:[%s375 + $0xbd8] sm:$0xff]
        %v1017 = vld [vmem:[%s375 + $0xbe0] sm:$0xff]
        %v1018 = vld [vmem:[%s375 + $0xbe8] sm:$0xff]
        %v1019 = vld [vmem:[%s375 + $0xbf0] sm:$0xff]
        %v1020 = vld [vmem:[%s375 + $0xbf8] sm:$0xff]
        %v1021 = vld [vmem:[%s384] sm:$0xff]
        %v1022 = vld [vmem:[%s384 + $0x8] sm:$0xff]
        %v1023 = vld [vmem:[%s384 + $0x10] sm:$0xff]
        %v1027 = vlaneseq
        %v1028 = vshrl.u32 %v1027, 7
        %v1029 = vsub.s32 0, %v1028
        %v1030 = vrot.slane %v1021, %v1029
        %v1031 = vlaneseq
        %v1032 = vshrl.u32 %v1031, 7
        %v1033 = vsub.s32 1, %v1032
        %v1034 = vrot.slane %v1021, %v1033
        %v1035 = vlaneseq
        %v1036 = vshrl.u32 %v1035, 7
        %v1037 = vsub.s32 2, %v1036
        %v1038 = vrot.slane %v1021, %v1037
        %v1039 = vlaneseq
        %v1040 = vshrl.u32 %v1039, 7
        %v1041 = vsub.s32 3, %v1040
        %v1042 = vrot.slane %v1021, %v1041
        %v1043 = vlaneseq
        %v1044 = vshrl.u32 %v1043, 7
        %v1045 = vsub.s32 4, %v1044
        %v1046 = vrot.slane %v1021, %v1045
        %v1047 = vlaneseq
        %v1048 = vshrl.u32 %v1047, 7
        %v1049 = vsub.s32 5, %v1048
        %v1050 = vrot.slane %v1021, %v1049
        %v1051 = vlaneseq
        %v1052 = vshrl.u32 %v1051, 7
        %v1053 = vsub.s32 6, %v1052
        %v1054 = vrot.slane %v1021, %v1053
        %v1055 = vlaneseq
        %v1056 = vshrl.u32 %v1055, 7
        %v1057 = vsub.s32 7, %v1056
        %v1058 = vrot.slane %v1021, %v1057
        %v1059 = vlaneseq
        %v1060 = vshrl.u32 %v1059, 7
        %v1061 = vsub.s32 0, %v1060
        %v1062 = vrot.slane %v1022, %v1061
        %v1063 = vlaneseq
        %v1064 = vshrl.u32 %v1063, 7
        %v1065 = vsub.s32 1, %v1064
        %v1066 = vrot.slane %v1022, %v1065
        %v1067 = vlaneseq
        %v1068 = vshrl.u32 %v1067, 7
        %v1069 = vsub.s32 2, %v1068
        %v1070 = vrot.slane %v1022, %v1069
        %v1071 = vlaneseq
        %v1072 = vshrl.u32 %v1071, 7
        %v1073 = vsub.s32 3, %v1072
        %v1074 = vrot.slane %v1022, %v1073
        %v1075 = vlaneseq
        %v1076 = vshrl.u32 %v1075, 7
        %v1077 = vsub.s32 4, %v1076
        %v1078 = vrot.slane %v1022, %v1077
        %v1079 = vlaneseq
        %v1080 = vshrl.u32 %v1079, 7
        %v1081 = vsub.s32 5, %v1080
        %v1082 = vrot.slane %v1022, %v1081
        %v1083 = vlaneseq
        %v1084 = vshrl.u32 %v1083, 7
        %v1085 = vsub.s32 6, %v1084
        %v1086 = vrot.slane %v1022, %v1085
        %v1087 = vlaneseq
        %v1088 = vshrl.u32 %v1087, 7
        %v1089 = vsub.s32 7, %v1088
        %v1090 = vrot.slane %v1022, %v1089
        %v1091 = vlaneseq
        %v1092 = vshrl.u32 %v1091, 7
        %v1093 = vsub.s32 0, %v1092
        %v1094 = vrot.slane %v1023, %v1093
        %v1095 = vlaneseq
        %v1096 = vshrl.u32 %v1095, 7
        %v1097 = vsub.s32 1, %v1096
        %v1098 = vrot.slane %v1023, %v1097
        %v1099 = vlaneseq
        %v1100 = vshrl.u32 %v1099, 7
        %v1101 = vsub.s32 2, %v1100
        %v1102 = vrot.slane %v1023, %v1101
        %v1103 = vlaneseq
        %v1104 = vshrl.u32 %v1103, 7
        %v1105 = vsub.s32 3, %v1104
        %v1106 = vrot.slane %v1023, %v1105
        %v1107 = vlaneseq
        %v1108 = vshrl.u32 %v1107, 7
        %v1109 = vsub.s32 4, %v1108
        %v1110 = vrot.slane %v1023, %v1109
        %v1111 = vlaneseq
        %v1112 = vshrl.u32 %v1111, 7
        %v1113 = vsub.s32 5, %v1112
        %v1114 = vrot.slane %v1023, %v1113
        %v1115 = vlaneseq
        %v1116 = vshrl.u32 %v1115, 7
        %v1117 = vsub.s32 6, %v1116
        %v1118 = vrot.slane %v1023, %v1117
        %v1119 = vlaneseq
        %v1120 = vshrl.u32 %v1119, 7
        %v1121 = vsub.s32 7, %v1120
        %v1122 = vrot.slane %v1023, %v1121
        %v1531 = vunpack.c.l.b16 %v637
        %v1532 = vunpack.c.h.b16 %v637
        %v1533 = vunpack.c.l.b16 %v638
        %v1534 = vunpack.c.h.b16 %v638
        %v1535 = vunpack.c.l.b16 %v639
        %v1536 = vunpack.c.h.b16 %v639
        %v1537 = vunpack.c.l.b16 %v640
        %v1538 = vunpack.c.h.b16 %v640
        %v1539 = vunpack.c.l.b16 %v641
        %v1540 = vunpack.c.h.b16 %v641
        %v1541 = vunpack.c.l.b16 %v642
        %v1542 = vunpack.c.h.b16 %v642
        %v1543 = vunpack.c.l.b16 %v643
        %v1544 = vunpack.c.h.b16 %v643
        %v1545 = vunpack.c.l.b16 %v644
        %v1546 = vunpack.c.h.b16 %v644
        %v1547 = vunpack.c.l.b16 %v645
        %v1548 = vunpack.c.h.b16 %v645
        %v1549 = vunpack.c.l.b16 %v646
        %v1550 = vunpack.c.h.b16 %v646
        %v1551 = vunpack.c.l.b16 %v647
        %v1552 = vunpack.c.h.b16 %v647
        %v1553 = vunpack.c.l.b16 %v648
        %v1554 = vunpack.c.h.b16 %v648
        %v1555 = vunpack.c.l.b16 %v649
        %v1556 = vunpack.c.h.b16 %v649
        %v1557 = vunpack.c.l.b16 %v650
        %v1558 = vunpack.c.h.b16 %v650
        %v1559 = vunpack.c.l.b16 %v651
        %v1560 = vunpack.c.h.b16 %v651
        %v1561 = vunpack.c.l.b16 %v652
        %v1562 = vunpack.c.h.b16 %v652
        %v1563 = vunpack.c.l.b16 %v653
        %v1564 = vunpack.c.h.b16 %v653
        %v1565 = vunpack.c.l.b16 %v654
        %v1566 = vunpack.c.h.b16 %v654
        %v1567 = vunpack.c.l.b16 %v655
        %v1568 = vunpack.c.h.b16 %v655
        %v1569 = vunpack.c.l.b16 %v656
        %v1570 = vunpack.c.h.b16 %v656
        %v1571 = vunpack.c.l.b16 %v657
        %v1572 = vunpack.c.h.b16 %v657
        %v1573 = vunpack.c.l.b16 %v658
        %v1574 = vunpack.c.h.b16 %v658
        %v1575 = vunpack.c.l.b16 %v659
        %v1576 = vunpack.c.h.b16 %v659
        %v1577 = vunpack.c.l.b16 %v660
        %v1578 = vunpack.c.h.b16 %v660
        %v1579 = vunpack.c.l.b16 %v661
        %v1580 = vunpack.c.h.b16 %v661
        %v1581 = vunpack.c.l.b16 %v662
        %v1582 = vunpack.c.h.b16 %v662
        %v1583 = vunpack.c.l.b16 %v663
        %v1584 = vunpack.c.h.b16 %v663
        %v1585 = vunpack.c.l.b16 %v664
        %v1586 = vunpack.c.h.b16 %v664
        %v1587 = vunpack.c.l.b16 %v665
        %v1588 = vunpack.c.h.b16 %v665
        %v1589 = vunpack.c.l.b16 %v666
        %v1590 = vunpack.c.h.b16 %v666
        %v1591 = vunpack.c.l.b16 %v667
        %v1592 = vunpack.c.h.b16 %v667
        %v1593 = vunpack.c.l.b16 %v668
        %v1594 = vunpack.c.h.b16 %v668
        %v1595 = vunpack.c.l.b16 %v669
        %v1596 = vunpack.c.h.b16 %v669
        %v1597 = vunpack.c.l.b16 %v670
        %v1598 = vunpack.c.h.b16 %v670
        %v1599 = vunpack.c.l.b16 %v671
        %v1600 = vunpack.c.h.b16 %v671
        %v1601 = vunpack.c.l.b16 %v672
        %v1602 = vunpack.c.h.b16 %v672
        %v1603 = vunpack.c.l.b16 %v673
        %v1604 = vunpack.c.h.b16 %v673
        %v1605 = vunpack.c.l.b16 %v674
        %v1606 = vunpack.c.h.b16 %v674
        %v1607 = vunpack.c.l.b16 %v675
        %v1608 = vunpack.c.h.b16 %v675
        %v1609 = vunpack.c.l.b16 %v676
        %v1610 = vunpack.c.h.b16 %v676
        %v1611 = vunpack.c.l.b16 %v677
        %v1612 = vunpack.c.h.b16 %v677
        %v1613 = vunpack.c.l.b16 %v678
        %v1614 = vunpack.c.h.b16 %v678
        %v1615 = vunpack.c.l.b16 %v679
        %v1616 = vunpack.c.h.b16 %v679
        %v1617 = vunpack.c.l.b16 %v680
        %v1618 = vunpack.c.h.b16 %v680
        %v1619 = vunpack.c.l.b16 %v681
        %v1620 = vunpack.c.h.b16 %v681
        %v1621 = vunpack.c.l.b16 %v682
        %v1622 = vunpack.c.h.b16 %v682
        %v1623 = vunpack.c.l.b16 %v683
        %v1624 = vunpack.c.h.b16 %v683
        %v1625 = vunpack.c.l.b16 %v684
        %v1626 = vunpack.c.h.b16 %v684
        %v1627 = vunpack.c.l.b16 %v685
        %v1628 = vunpack.c.h.b16 %v685
        %v1629 = vunpack.c.l.b16 %v686
        %v1630 = vunpack.c.h.b16 %v686
        %v1631 = vunpack.c.l.b16 %v687
        %v1632 = vunpack.c.h.b16 %v687
        %v1633 = vunpack.c.l.b16 %v688
        %v1634 = vunpack.c.h.b16 %v688
        %v1635 = vunpack.c.l.b16 %v689
        %v1636 = vunpack.c.h.b16 %v689
        %v1637 = vunpack.c.l.b16 %v690
        %v1638 = vunpack.c.h.b16 %v690
        %v1639 = vunpack.c.l.b16 %v691
        %v1640 = vunpack.c.h.b16 %v691
        %v1641 = vunpack.c.l.b16 %v692
        %v1642 = vunpack.c.h.b16 %v692
        %v1643 = vunpack.c.l.b16 %v693
        %v1644 = vunpack.c.h.b16 %v693
        %v1645 = vunpack.c.l.b16 %v694
        %v1646 = vunpack.c.h.b16 %v694
        %v1647 = vunpack.c.l.b16 %v695
        %v1648 = vunpack.c.h.b16 %v695
        %v1649 = vunpack.c.l.b16 %v696
        %v1650 = vunpack.c.h.b16 %v696
        %v1651 = vunpack.c.l.b16 %v697
        %v1652 = vunpack.c.h.b16 %v697
        %v1653 = vunpack.c.l.b16 %v698
        %v1654 = vunpack.c.h.b16 %v698
        %v1655 = vunpack.c.l.b16 %v699
        %v1656 = vunpack.c.h.b16 %v699
        %v1657 = vunpack.c.l.b16 %v700
        %v1658 = vunpack.c.h.b16 %v700
        %v1659 = vunpack.c.l.b16 %v701
        %v1660 = vunpack.c.h.b16 %v701
        %v1661 = vunpack.c.l.b16 %v702
        %v1662 = vunpack.c.h.b16 %v702
        %v1663 = vunpack.c.l.b16 %v703
        %v1664 = vunpack.c.h.b16 %v703
        %v1665 = vunpack.c.l.b16 %v704
        %v1666 = vunpack.c.h.b16 %v704
        %v1667 = vunpack.c.l.b16 %v705
        %v1668 = vunpack.c.h.b16 %v705
        %v1669 = vunpack.c.l.b16 %v706
        %v1670 = vunpack.c.h.b16 %v706
        %v1671 = vunpack.c.l.b16 %v707
        %v1672 = vunpack.c.h.b16 %v707
        %v1673 = vunpack.c.l.b16 %v708
        %v1674 = vunpack.c.h.b16 %v708
        %v1675 = vunpack.c.l.b16 %v709
        %v1676 = vunpack.c.h.b16 %v709
        %v1677 = vunpack.c.l.b16 %v710
        %v1678 = vunpack.c.h.b16 %v710
        %v1679 = vunpack.c.l.b16 %v711
        %v1680 = vunpack.c.h.b16 %v711
        %v1681 = vunpack.c.l.b16 %v712
        %v1682 = vunpack.c.h.b16 %v712
        %v1683 = vunpack.c.l.b16 %v713
        %v1684 = vunpack.c.h.b16 %v713
        %v1685 = vunpack.c.l.b16 %v714
        %v1686 = vunpack.c.h.b16 %v714
        %v1687 = vunpack.c.l.b16 %v715
        %v1688 = vunpack.c.h.b16 %v715
        %v1689 = vunpack.c.l.b16 %v716
        %v1690 = vunpack.c.h.b16 %v716
        %v1691 = vunpack.c.l.b16 %v717
        %v1692 = vunpack.c.h.b16 %v717
        %v1693 = vunpack.c.l.b16 %v718
        %v1694 = vunpack.c.h.b16 %v718
        %v1695 = vunpack.c.l.b16 %v719
        %v1696 = vunpack.c.h.b16 %v719
        %v1697 = vunpack.c.l.b16 %v720
        %v1698 = vunpack.c.h.b16 %v720
        %v1699 = vunpack.c.l.b16 %v721
        %v1700 = vunpack.c.h.b16 %v721
        %v1701 = vunpack.c.l.b16 %v722
        %v1702 = vunpack.c.h.b16 %v722
        %v1703 = vunpack.c.l.b16 %v723
        %v1704 = vunpack.c.h.b16 %v723
        %v1705 = vunpack.c.l.b16 %v724
        %v1706 = vunpack.c.h.b16 %v724
        %v1707 = vunpack.c.l.b16 %v725
        %v1708 = vunpack.c.h.b16 %v725
        %v1709 = vunpack.c.l.b16 %v726
        %v1710 = vunpack.c.h.b16 %v726
        %v1711 = vunpack.c.l.b16 %v727
        %v1712 = vunpack.c.h.b16 %v727
        %v1713 = vunpack.c.l.b16 %v728
        %v1714 = vunpack.c.h.b16 %v728
        %v1715 = vunpack.c.l.b16 %v729
        %v1716 = vunpack.c.h.b16 %v729
        %v1717 = vunpack.c.l.b16 %v730
        %v1718 = vunpack.c.h.b16 %v730
        %v1719 = vunpack.c.l.b16 %v731
        %v1720 = vunpack.c.h.b16 %v731
        %v1721 = vunpack.c.l.b16 %v732
        %v1722 = vunpack.c.h.b16 %v732
        %v1723 = vunpack.c.l.b16 %v733
        %v1724 = vunpack.c.h.b16 %v733
        %v1725 = vunpack.c.l.b16 %v734
        %v1726 = vunpack.c.h.b16 %v734
        %v1727 = vunpack.c.l.b16 %v735
        %v1728 = vunpack.c.h.b16 %v735
        %v1729 = vunpack.c.l.b16 %v736
        %v1730 = vunpack.c.h.b16 %v736
        %v1731 = vunpack.c.l.b16 %v737
        %v1732 = vunpack.c.h.b16 %v737
        %v1733 = vunpack.c.l.b16 %v738
        %v1734 = vunpack.c.h.b16 %v738
        %v1735 = vunpack.c.l.b16 %v739
        %v1736 = vunpack.c.h.b16 %v739
        %v1737 = vunpack.c.l.b16 %v740
        %v1738 = vunpack.c.h.b16 %v740
        %v1739 = vunpack.c.l.b16 %v741
        %v1740 = vunpack.c.h.b16 %v741
        %v1741 = vunpack.c.l.b16 %v742
        %v1742 = vunpack.c.h.b16 %v742
        %v1743 = vunpack.c.l.b16 %v743
        %v1744 = vunpack.c.h.b16 %v743
        %v1745 = vunpack.c.l.b16 %v744
        %v1746 = vunpack.c.h.b16 %v744
        %v1747 = vunpack.c.l.b16 %v745
        %v1748 = vunpack.c.h.b16 %v745
        %v1749 = vunpack.c.l.b16 %v746
        %v1750 = vunpack.c.h.b16 %v746
        %v1751 = vunpack.c.l.b16 %v747
        %v1752 = vunpack.c.h.b16 %v747
        %v1753 = vunpack.c.l.b16 %v748
        %v1754 = vunpack.c.h.b16 %v748
        %v1755 = vunpack.c.l.b16 %v749
        %v1756 = vunpack.c.h.b16 %v749
        %v1757 = vunpack.c.l.b16 %v750
        %v1758 = vunpack.c.h.b16 %v750
        %v1759 = vunpack.c.l.b16 %v751
        %v1760 = vunpack.c.h.b16 %v751
        %v1761 = vunpack.c.l.b16 %v752
        %v1762 = vunpack.c.h.b16 %v752
        %v1763 = vunpack.c.l.b16 %v753
        %v1764 = vunpack.c.h.b16 %v753
        %v1765 = vunpack.c.l.b16 %v754
        %v1766 = vunpack.c.h.b16 %v754
        %v1767 = vunpack.c.l.b16 %v755
        %v1768 = vunpack.c.h.b16 %v755
        %v1769 = vunpack.c.l.b16 %v756
        %v1770 = vunpack.c.h.b16 %v756
        %v1771 = vunpack.c.l.b16 %v757
        %v1772 = vunpack.c.h.b16 %v757
        %v1773 = vunpack.c.l.b16 %v758
        %v1774 = vunpack.c.h.b16 %v758
        %v1775 = vunpack.c.l.b16 %v759
        %v1776 = vunpack.c.h.b16 %v759
        %v1777 = vunpack.c.l.b16 %v760
        %v1778 = vunpack.c.h.b16 %v760
        %v1779 = vunpack.c.l.b16 %v761
        %v1780 = vunpack.c.h.b16 %v761
        %v1781 = vunpack.c.l.b16 %v762
        %v1782 = vunpack.c.h.b16 %v762
        %v1783 = vunpack.c.l.b16 %v763
        %v1784 = vunpack.c.h.b16 %v763
        %v1785 = vunpack.c.l.b16 %v764
        %v1786 = vunpack.c.h.b16 %v764
        %v1787 = vunpack.c.l.b16 %v765
        %v1788 = vunpack.c.h.b16 %v765
        %v1789 = vunpack.c.l.b16 %v766
        %v1790 = vunpack.c.h.b16 %v766
        %v1791 = vunpack.c.l.b16 %v767
        %v1792 = vunpack.c.h.b16 %v767
        %v1793 = vunpack.c.l.b16 %v768
        %v1794 = vunpack.c.h.b16 %v768
        %v1795 = vunpack.c.l.b16 %v769
        %v1796 = vunpack.c.h.b16 %v769
        %v1797 = vunpack.c.l.b16 %v770
        %v1798 = vunpack.c.h.b16 %v770
        %v1799 = vunpack.c.l.b16 %v771
        %v1800 = vunpack.c.h.b16 %v771
        %v1801 = vunpack.c.l.b16 %v772
        %v1802 = vunpack.c.h.b16 %v772
        %v1803 = vunpack.c.l.b16 %v773
        %v1804 = vunpack.c.h.b16 %v773
        %v1805 = vunpack.c.l.b16 %v774
        %v1806 = vunpack.c.h.b16 %v774
        %v1807 = vunpack.c.l.b16 %v775
        %v1808 = vunpack.c.h.b16 %v775
        %v1809 = vunpack.c.l.b16 %v776
        %v1810 = vunpack.c.h.b16 %v776
        %v1811 = vunpack.c.l.b16 %v777
        %v1812 = vunpack.c.h.b16 %v777
        %v1813 = vunpack.c.l.b16 %v778
        %v1814 = vunpack.c.h.b16 %v778
        %v1815 = vunpack.c.l.b16 %v779
        %v1816 = vunpack.c.h.b16 %v779
        %v1817 = vunpack.c.l.b16 %v780
        %v1818 = vunpack.c.h.b16 %v780
        %v1819 = vunpack.c.l.b16 %v781
        %v1820 = vunpack.c.h.b16 %v781
        %v1821 = vunpack.c.l.b16 %v782
        %v1822 = vunpack.c.h.b16 %v782
        %v1823 = vunpack.c.l.b16 %v783
        %v1824 = vunpack.c.h.b16 %v783
        %v1825 = vunpack.c.l.b16 %v784
        %v1826 = vunpack.c.h.b16 %v784
        %v1827 = vunpack.c.l.b16 %v785
        %v1828 = vunpack.c.h.b16 %v785
        %v1829 = vunpack.c.l.b16 %v786
        %v1830 = vunpack.c.h.b16 %v786
        %v1831 = vunpack.c.l.b16 %v787
        %v1832 = vunpack.c.h.b16 %v787
        %v1833 = vunpack.c.l.b16 %v788
        %v1834 = vunpack.c.h.b16 %v788
        %v1835 = vunpack.c.l.b16 %v789
        %v1836 = vunpack.c.h.b16 %v789
        %v1837 = vunpack.c.l.b16 %v790
        %v1838 = vunpack.c.h.b16 %v790
        %v1839 = vunpack.c.l.b16 %v791
        %v1840 = vunpack.c.h.b16 %v791
        %v1841 = vunpack.c.l.b16 %v792
        %v1842 = vunpack.c.h.b16 %v792
        %v1843 = vunpack.c.l.b16 %v793
        %v1844 = vunpack.c.h.b16 %v793
        %v1845 = vunpack.c.l.b16 %v794
        %v1846 = vunpack.c.h.b16 %v794
        %v1847 = vunpack.c.l.b16 %v795
        %v1848 = vunpack.c.h.b16 %v795
        %v1849 = vunpack.c.l.b16 %v796
        %v1850 = vunpack.c.h.b16 %v796
        %v1851 = vunpack.c.l.b16 %v797
        %v1852 = vunpack.c.h.b16 %v797
        %v1853 = vunpack.c.l.b16 %v798
        %v1854 = vunpack.c.h.b16 %v798
        %v1855 = vunpack.c.l.b16 %v799
        %v1856 = vunpack.c.h.b16 %v799
        %v1857 = vunpack.c.l.b16 %v800
        %v1858 = vunpack.c.h.b16 %v800
        %v1859 = vunpack.c.l.b16 %v801
        %v1860 = vunpack.c.h.b16 %v801
        %v1861 = vunpack.c.l.b16 %v802
        %v1862 = vunpack.c.h.b16 %v802
        %v1863 = vunpack.c.l.b16 %v803
        %v1864 = vunpack.c.h.b16 %v803
        %v1865 = vunpack.c.l.b16 %v804
        %v1866 = vunpack.c.h.b16 %v804
        %v1867 = vunpack.c.l.b16 %v805
        %v1868 = vunpack.c.h.b16 %v805
        %v1869 = vunpack.c.l.b16 %v806
        %v1870 = vunpack.c.h.b16 %v806
        %v1871 = vunpack.c.l.b16 %v807
        %v1872 = vunpack.c.h.b16 %v807
        %v1873 = vunpack.c.l.b16 %v808
        %v1874 = vunpack.c.h.b16 %v808
        %v1875 = vunpack.c.l.b16 %v809
        %v1876 = vunpack.c.h.b16 %v809
        %v1877 = vunpack.c.l.b16 %v810
        %v1878 = vunpack.c.h.b16 %v810
        %v1879 = vunpack.c.l.b16 %v811
        %v1880 = vunpack.c.h.b16 %v811
        %v1881 = vunpack.c.l.b16 %v812
        %v1882 = vunpack.c.h.b16 %v812
        %v1883 = vunpack.c.l.b16 %v813
        %v1884 = vunpack.c.h.b16 %v813
        %v1885 = vunpack.c.l.b16 %v814
        %v1886 = vunpack.c.h.b16 %v814
        %v1887 = vunpack.c.l.b16 %v815
        %v1888 = vunpack.c.h.b16 %v815
        %v1889 = vunpack.c.l.b16 %v816
        %v1890 = vunpack.c.h.b16 %v816
        %v1891 = vunpack.c.l.b16 %v817
        %v1892 = vunpack.c.h.b16 %v817
        %v1893 = vunpack.c.l.b16 %v818
        %v1894 = vunpack.c.h.b16 %v818
        %v1895 = vunpack.c.l.b16 %v819
        %v1896 = vunpack.c.h.b16 %v819
        %v1897 = vunpack.c.l.b16 %v820
        %v1898 = vunpack.c.h.b16 %v820
        %v1899 = vunpack.c.l.b16 %v821
        %v1900 = vunpack.c.h.b16 %v821
        %v1901 = vunpack.c.l.b16 %v822
        %v1902 = vunpack.c.h.b16 %v822
        %v1903 = vunpack.c.l.b16 %v823
        %v1904 = vunpack.c.h.b16 %v823
        %v1905 = vunpack.c.l.b16 %v824
        %v1906 = vunpack.c.h.b16 %v824
        %v1907 = vunpack.c.l.b16 %v825
        %v1908 = vunpack.c.h.b16 %v825
        %v1909 = vunpack.c.l.b16 %v826
        %v1910 = vunpack.c.h.b16 %v826
        %v1911 = vunpack.c.l.b16 %v827
        %v1912 = vunpack.c.h.b16 %v827
        %v1913 = vunpack.c.l.b16 %v828
        %v1914 = vunpack.c.h.b16 %v828
        %v1915 = vunpack.c.l.b16 %v829
        %v1916 = vunpack.c.h.b16 %v829
        %v1917 = vunpack.c.l.b16 %v830
        %v1918 = vunpack.c.h.b16 %v830
        %v1919 = vunpack.c.l.b16 %v831
        %v1920 = vunpack.c.h.b16 %v831
        %v1921 = vunpack.c.l.b16 %v832
        %v1922 = vunpack.c.h.b16 %v832
        %v1923 = vunpack.c.l.b16 %v833
        %v1924 = vunpack.c.h.b16 %v833
        %v1925 = vunpack.c.l.b16 %v834
        %v1926 = vunpack.c.h.b16 %v834
        %v1927 = vunpack.c.l.b16 %v835
        %v1928 = vunpack.c.h.b16 %v835
        %v1929 = vunpack.c.l.b16 %v836
        %v1930 = vunpack.c.h.b16 %v836
        %v1931 = vunpack.c.l.b16 %v837
        %v1932 = vunpack.c.h.b16 %v837
        %v1933 = vunpack.c.l.b16 %v838
        %v1934 = vunpack.c.h.b16 %v838
        %v1935 = vunpack.c.l.b16 %v839
        %v1936 = vunpack.c.h.b16 %v839
        %v1937 = vunpack.c.l.b16 %v840
        %v1938 = vunpack.c.h.b16 %v840
        %v1939 = vunpack.c.l.b16 %v841
        %v1940 = vunpack.c.h.b16 %v841
        %v1941 = vunpack.c.l.b16 %v842
        %v1942 = vunpack.c.h.b16 %v842
        %v1943 = vunpack.c.l.b16 %v843
        %v1944 = vunpack.c.h.b16 %v843
        %v1945 = vunpack.c.l.b16 %v844
        %v1946 = vunpack.c.h.b16 %v844
        %v1947 = vunpack.c.l.b16 %v845
        %v1948 = vunpack.c.h.b16 %v845
        %v1949 = vunpack.c.l.b16 %v846
        %v1950 = vunpack.c.h.b16 %v846
        %v1951 = vunpack.c.l.b16 %v847
        %v1952 = vunpack.c.h.b16 %v847
        %v1953 = vunpack.c.l.b16 %v848
        %v1954 = vunpack.c.h.b16 %v848
        %v1955 = vunpack.c.l.b16 %v849
        %v1956 = vunpack.c.h.b16 %v849
        %v1957 = vunpack.c.l.b16 %v850
        %v1958 = vunpack.c.h.b16 %v850
        %v1959 = vunpack.c.l.b16 %v851
        %v1960 = vunpack.c.h.b16 %v851
        %v1961 = vunpack.c.l.b16 %v852
        %v1962 = vunpack.c.h.b16 %v852
        %v1963 = vunpack.c.l.b16 %v853
        %v1964 = vunpack.c.h.b16 %v853
        %v1965 = vunpack.c.l.b16 %v854
        %v1966 = vunpack.c.h.b16 %v854
        %v1967 = vunpack.c.l.b16 %v855
        %v1968 = vunpack.c.h.b16 %v855
        %v1969 = vunpack.c.l.b16 %v856
        %v1970 = vunpack.c.h.b16 %v856
        %v1971 = vunpack.c.l.b16 %v857
        %v1972 = vunpack.c.h.b16 %v857
        %v1973 = vunpack.c.l.b16 %v858
        %v1974 = vunpack.c.h.b16 %v858
        %v1975 = vunpack.c.l.b16 %v859
        %v1976 = vunpack.c.h.b16 %v859
        %v1977 = vunpack.c.l.b16 %v860
        %v1978 = vunpack.c.h.b16 %v860
        %v1979 = vunpack.c.l.b16 %v861
        %v1980 = vunpack.c.h.b16 %v861
        %v1981 = vunpack.c.l.b16 %v862
        %v1982 = vunpack.c.h.b16 %v862
        %v1983 = vunpack.c.l.b16 %v863
        %v1984 = vunpack.c.h.b16 %v863
        %v1985 = vunpack.c.l.b16 %v864
        %v1986 = vunpack.c.h.b16 %v864
        %v1987 = vunpack.c.l.b16 %v865
        %v1988 = vunpack.c.h.b16 %v865
        %v1989 = vunpack.c.l.b16 %v866
        %v1990 = vunpack.c.h.b16 %v866
        %v1991 = vunpack.c.l.b16 %v867
        %v1992 = vunpack.c.h.b16 %v867
        %v1993 = vunpack.c.l.b16 %v868
        %v1994 = vunpack.c.h.b16 %v868
        %v1995 = vunpack.c.l.b16 %v869
        %v1996 = vunpack.c.h.b16 %v869
        %v1997 = vunpack.c.l.b16 %v870
        %v1998 = vunpack.c.h.b16 %v870
        %v1999 = vunpack.c.l.b16 %v871
        %v2000 = vunpack.c.h.b16 %v871
        %v2001 = vunpack.c.l.b16 %v872
        %v2002 = vunpack.c.h.b16 %v872
        %v2003 = vunpack.c.l.b16 %v873
        %v2004 = vunpack.c.h.b16 %v873
        %v2005 = vunpack.c.l.b16 %v874
        %v2006 = vunpack.c.h.b16 %v874
        %v2007 = vunpack.c.l.b16 %v875
        %v2008 = vunpack.c.h.b16 %v875
        %v2009 = vunpack.c.l.b16 %v876
        %v2010 = vunpack.c.h.b16 %v876
        %v2011 = vunpack.c.l.b16 %v877
        %v2012 = vunpack.c.h.b16 %v877
        %v2013 = vunpack.c.l.b16 %v878
        %v2014 = vunpack.c.h.b16 %v878
        %v2015 = vunpack.c.l.b16 %v879
        %v2016 = vunpack.c.h.b16 %v879
        %v2017 = vunpack.c.l.b16 %v880
        %v2018 = vunpack.c.h.b16 %v880
        %v2019 = vunpack.c.l.b16 %v881
        %v2020 = vunpack.c.h.b16 %v881
        %v2021 = vunpack.c.l.b16 %v882
        %v2022 = vunpack.c.h.b16 %v882
        %v2023 = vunpack.c.l.b16 %v883
        %v2024 = vunpack.c.h.b16 %v883
        %v2025 = vunpack.c.l.b16 %v884
        %v2026 = vunpack.c.h.b16 %v884
        %v2027 = vunpack.c.l.b16 %v885
        %v2028 = vunpack.c.h.b16 %v885
        %v2029 = vunpack.c.l.b16 %v886
        %v2030 = vunpack.c.h.b16 %v886
        %v2031 = vunpack.c.l.b16 %v887
        %v2032 = vunpack.c.h.b16 %v887
        %v2033 = vunpack.c.l.b16 %v888
        %v2034 = vunpack.c.h.b16 %v888
        %v2035 = vunpack.c.l.b16 %v889
        %v2036 = vunpack.c.h.b16 %v889
        %v2037 = vunpack.c.l.b16 %v890
        %v2038 = vunpack.c.h.b16 %v890
        %v2039 = vunpack.c.l.b16 %v891
        %v2040 = vunpack.c.h.b16 %v891
        %v2041 = vunpack.c.l.b16 %v892
        %v2042 = vunpack.c.h.b16 %v892
        %v2043 = vunpack.c.l.b16 %v893
        %v2044 = vunpack.c.h.b16 %v893
        %v2045 = vunpack.c.l.b16 %v894
        %v2046 = vunpack.c.h.b16 %v894
        %v2047 = vunpack.c.l.b16 %v895
        %v2048 = vunpack.c.h.b16 %v895
        %v2049 = vunpack.c.l.b16 %v896
        %v2050 = vunpack.c.h.b16 %v896
        %v2051 = vunpack.c.l.b16 %v897
        %v2052 = vunpack.c.h.b16 %v897
        %v2053 = vunpack.c.l.b16 %v898
        %v2054 = vunpack.c.h.b16 %v898
        %v2055 = vunpack.c.l.b16 %v899
        %v2056 = vunpack.c.h.b16 %v899
        %v2057 = vunpack.c.l.b16 %v900
        %v2058 = vunpack.c.h.b16 %v900
        %v2059 = vunpack.c.l.b16 %v901
        %v2060 = vunpack.c.h.b16 %v901
        %v2061 = vunpack.c.l.b16 %v902
        %v2062 = vunpack.c.h.b16 %v902
        %v2063 = vunpack.c.l.b16 %v903
        %v2064 = vunpack.c.h.b16 %v903
        %v2065 = vunpack.c.l.b16 %v904
        %v2066 = vunpack.c.h.b16 %v904
        %v2067 = vunpack.c.l.b16 %v905
        %v2068 = vunpack.c.h.b16 %v905
        %v2069 = vunpack.c.l.b16 %v906
        %v2070 = vunpack.c.h.b16 %v906
        %v2071 = vunpack.c.l.b16 %v907
        %v2072 = vunpack.c.h.b16 %v907
        %v2073 = vunpack.c.l.b16 %v908
        %v2074 = vunpack.c.h.b16 %v908
        %v2075 = vunpack.c.l.b16 %v909
        %v2076 = vunpack.c.h.b16 %v909
        %v2077 = vunpack.c.l.b16 %v910
        %v2078 = vunpack.c.h.b16 %v910
        %v2079 = vunpack.c.l.b16 %v911
        %v2080 = vunpack.c.h.b16 %v911
        %v2081 = vunpack.c.l.b16 %v912
        %v2082 = vunpack.c.h.b16 %v912
        %v2083 = vunpack.c.l.b16 %v913
        %v2084 = vunpack.c.h.b16 %v913
        %v2085 = vunpack.c.l.b16 %v914
        %v2086 = vunpack.c.h.b16 %v914
        %v2087 = vunpack.c.l.b16 %v915
        %v2088 = vunpack.c.h.b16 %v915
        %v2089 = vunpack.c.l.b16 %v916
        %v2090 = vunpack.c.h.b16 %v916
        %v2091 = vunpack.c.l.b16 %v917
        %v2092 = vunpack.c.h.b16 %v917
        %v2093 = vunpack.c.l.b16 %v918
        %v2094 = vunpack.c.h.b16 %v918
        %v2095 = vunpack.c.l.b16 %v919
        %v2096 = vunpack.c.h.b16 %v919
        %v2097 = vunpack.c.l.b16 %v920
        %v2098 = vunpack.c.h.b16 %v920
        %v2099 = vunpack.c.l.b16 %v921
        %v2100 = vunpack.c.h.b16 %v921
        %v2101 = vunpack.c.l.b16 %v922
        %v2102 = vunpack.c.h.b16 %v922
        %v2103 = vunpack.c.l.b16 %v923
        %v2104 = vunpack.c.h.b16 %v923
        %v2105 = vunpack.c.l.b16 %v924
        %v2106 = vunpack.c.h.b16 %v924
        %v2107 = vunpack.c.l.b16 %v925
        %v2108 = vunpack.c.h.b16 %v925
        %v2109 = vunpack.c.l.b16 %v926
        %v2110 = vunpack.c.h.b16 %v926
        %v2111 = vunpack.c.l.b16 %v927
        %v2112 = vunpack.c.h.b16 %v927
        %v2113 = vunpack.c.l.b16 %v928
        %v2114 = vunpack.c.h.b16 %v928
        %v2115 = vunpack.c.l.b16 %v929
        %v2116 = vunpack.c.h.b16 %v929
        %v2117 = vunpack.c.l.b16 %v930
        %v2118 = vunpack.c.h.b16 %v930
        %v2119 = vunpack.c.l.b16 %v931
        %v2120 = vunpack.c.h.b16 %v931
        %v2121 = vunpack.c.l.b16 %v932
        %v2122 = vunpack.c.h.b16 %v932
        %v2123 = vunpack.c.l.b16 %v933
        %v2124 = vunpack.c.h.b16 %v933
        %v2125 = vunpack.c.l.b16 %v934
        %v2126 = vunpack.c.h.b16 %v934
        %v2127 = vunpack.c.l.b16 %v935
        %v2128 = vunpack.c.h.b16 %v935
        %v2129 = vunpack.c.l.b16 %v936
        %v2130 = vunpack.c.h.b16 %v936
        %v2131 = vunpack.c.l.b16 %v937
        %v2132 = vunpack.c.h.b16 %v937
        %v2133 = vunpack.c.l.b16 %v938
        %v2134 = vunpack.c.h.b16 %v938
        %v2135 = vunpack.c.l.b16 %v939
        %v2136 = vunpack.c.h.b16 %v939
        %v2137 = vunpack.c.l.b16 %v940
        %v2138 = vunpack.c.h.b16 %v940
        %v2139 = vunpack.c.l.b16 %v941
        %v2140 = vunpack.c.h.b16 %v941
        %v2141 = vunpack.c.l.b16 %v942
        %v2142 = vunpack.c.h.b16 %v942
        %v2143 = vunpack.c.l.b16 %v943
        %v2144 = vunpack.c.h.b16 %v943
        %v2145 = vunpack.c.l.b16 %v944
        %v2146 = vunpack.c.h.b16 %v944
        %v2147 = vunpack.c.l.b16 %v945
        %v2148 = vunpack.c.h.b16 %v945
        %v2149 = vunpack.c.l.b16 %v946
        %v2150 = vunpack.c.h.b16 %v946
        %v2151 = vunpack.c.l.b16 %v947
        %v2152 = vunpack.c.h.b16 %v947
        %v2153 = vunpack.c.l.b16 %v948
        %v2154 = vunpack.c.h.b16 %v948
        %v2155 = vunpack.c.l.b16 %v949
        %v2156 = vunpack.c.h.b16 %v949
        %v2157 = vunpack.c.l.b16 %v950
        %v2158 = vunpack.c.h.b16 %v950
        %v2159 = vunpack.c.l.b16 %v951
        %v2160 = vunpack.c.h.b16 %v951
        %v2161 = vunpack.c.l.b16 %v952
        %v2162 = vunpack.c.h.b16 %v952
        %v2163 = vunpack.c.l.b16 %v953
        %v2164 = vunpack.c.h.b16 %v953
        %v2165 = vunpack.c.l.b16 %v954
        %v2166 = vunpack.c.h.b16 %v954
        %v2167 = vunpack.c.l.b16 %v955
        %v2168 = vunpack.c.h.b16 %v955
        %v2169 = vunpack.c.l.b16 %v956
        %v2170 = vunpack.c.h.b16 %v956
        %v2171 = vunpack.c.l.b16 %v957
        %v2172 = vunpack.c.h.b16 %v957
        %v2173 = vunpack.c.l.b16 %v958
        %v2174 = vunpack.c.h.b16 %v958
        %v2175 = vunpack.c.l.b16 %v959
        %v2176 = vunpack.c.h.b16 %v959
        %v2177 = vunpack.c.l.b16 %v960
        %v2178 = vunpack.c.h.b16 %v960
        %v2179 = vunpack.c.l.b16 %v961
        %v2180 = vunpack.c.h.b16 %v961
        %v2181 = vunpack.c.l.b16 %v962
        %v2182 = vunpack.c.h.b16 %v962
        %v2183 = vunpack.c.l.b16 %v963
        %v2184 = vunpack.c.h.b16 %v963
        %v2185 = vunpack.c.l.b16 %v964
        %v2186 = vunpack.c.h.b16 %v964
        %v2187 = vunpack.c.l.b16 %v965
        %v2188 = vunpack.c.h.b16 %v965
        %v2189 = vunpack.c.l.b16 %v966
        %v2190 = vunpack.c.h.b16 %v966
        %v2191 = vunpack.c.l.b16 %v967
        %v2192 = vunpack.c.h.b16 %v967
        %v2193 = vunpack.c.l.b16 %v968
        %v2194 = vunpack.c.h.b16 %v968
        %v2195 = vunpack.c.l.b16 %v969
        %v2196 = vunpack.c.h.b16 %v969
        %v2197 = vunpack.c.l.b16 %v970
        %v2198 = vunpack.c.h.b16 %v970
        %v2199 = vunpack.c.l.b16 %v971
        %v2200 = vunpack.c.h.b16 %v971
        %v2201 = vunpack.c.l.b16 %v972
        %v2202 = vunpack.c.h.b16 %v972
        %v2203 = vunpack.c.l.b16 %v973
        %v2204 = vunpack.c.h.b16 %v973
        %v2205 = vunpack.c.l.b16 %v974
        %v2206 = vunpack.c.h.b16 %v974
        %v2207 = vunpack.c.l.b16 %v975
        %v2208 = vunpack.c.h.b16 %v975
        %v2209 = vunpack.c.l.b16 %v976
        %v2210 = vunpack.c.h.b16 %v976
        %v2211 = vunpack.c.l.b16 %v977
        %v2212 = vunpack.c.h.b16 %v977
        %v2213 = vunpack.c.l.b16 %v978
        %v2214 = vunpack.c.h.b16 %v978
        %v2215 = vunpack.c.l.b16 %v979
        %v2216 = vunpack.c.h.b16 %v979
        %v2217 = vunpack.c.l.b16 %v980
        %v2218 = vunpack.c.h.b16 %v980
        %v2219 = vunpack.c.l.b16 %v981
        %v2220 = vunpack.c.h.b16 %v981
        %v2221 = vunpack.c.l.b16 %v982
        %v2222 = vunpack.c.h.b16 %v982
        %v2223 = vunpack.c.l.b16 %v983
        %v2224 = vunpack.c.h.b16 %v983
        %v2225 = vunpack.c.l.b16 %v984
        %v2226 = vunpack.c.h.b16 %v984
        %v2227 = vunpack.c.l.b16 %v985
        %v2228 = vunpack.c.h.b16 %v985
        %v2229 = vunpack.c.l.b16 %v986
        %v2230 = vunpack.c.h.b16 %v986
        %v2231 = vunpack.c.l.b16 %v987
        %v2232 = vunpack.c.h.b16 %v987
        %v2233 = vunpack.c.l.b16 %v988
        %v2234 = vunpack.c.h.b16 %v988
        %v2235 = vunpack.c.l.b16 %v989
        %v2236 = vunpack.c.h.b16 %v989
        %v2237 = vunpack.c.l.b16 %v990
        %v2238 = vunpack.c.h.b16 %v990
        %v2239 = vunpack.c.l.b16 %v991
        %v2240 = vunpack.c.h.b16 %v991
        %v2241 = vunpack.c.l.b16 %v992
        %v2242 = vunpack.c.h.b16 %v992
        %v2243 = vunpack.c.l.b16 %v993
        %v2244 = vunpack.c.h.b16 %v993
        %v2245 = vunpack.c.l.b16 %v994
        %v2246 = vunpack.c.h.b16 %v994
        %v2247 = vunpack.c.l.b16 %v995
        %v2248 = vunpack.c.h.b16 %v995
        %v2249 = vunpack.c.l.b16 %v996
        %v2250 = vunpack.c.h.b16 %v996
        %v2251 = vunpack.c.l.b16 %v997
        %v2252 = vunpack.c.h.b16 %v997
        %v2253 = vunpack.c.l.b16 %v998
        %v2254 = vunpack.c.h.b16 %v998
        %v2255 = vunpack.c.l.b16 %v999
        %v2256 = vunpack.c.h.b16 %v999
        %v2257 = vunpack.c.l.b16 %v1000
        %v2258 = vunpack.c.h.b16 %v1000
        %v2259 = vunpack.c.l.b16 %v1001
        %v2260 = vunpack.c.h.b16 %v1001
        %v2261 = vunpack.c.l.b16 %v1002
        %v2262 = vunpack.c.h.b16 %v1002
        %v2263 = vunpack.c.l.b16 %v1003
        %v2264 = vunpack.c.h.b16 %v1003
        %v2265 = vunpack.c.l.b16 %v1004
        %v2266 = vunpack.c.h.b16 %v1004
        %v2267 = vunpack.c.l.b16 %v1005
        %v2268 = vunpack.c.h.b16 %v1005
        %v2269 = vunpack.c.l.b16 %v1006
        %v2270 = vunpack.c.h.b16 %v1006
        %v2271 = vunpack.c.l.b16 %v1007
        %v2272 = vunpack.c.h.b16 %v1007
        %v2273 = vunpack.c.l.b16 %v1008
        %v2274 = vunpack.c.h.b16 %v1008
        %v2275 = vunpack.c.l.b16 %v1009
        %v2276 = vunpack.c.h.b16 %v1009
        %v2277 = vunpack.c.l.b16 %v1010
        %v2278 = vunpack.c.h.b16 %v1010
        %v2279 = vunpack.c.l.b16 %v1011
        %v2280 = vunpack.c.h.b16 %v1011
        %v2281 = vunpack.c.l.b16 %v1012
        %v2282 = vunpack.c.h.b16 %v1012
        %v2283 = vunpack.c.l.b16 %v1013
        %v2284 = vunpack.c.h.b16 %v1013
        %v2285 = vunpack.c.l.b16 %v1014
        %v2286 = vunpack.c.h.b16 %v1014
        %v2287 = vunpack.c.l.b16 %v1015
        %v2288 = vunpack.c.h.b16 %v1015
        %v2289 = vunpack.c.l.b16 %v1016
        %v2290 = vunpack.c.h.b16 %v1016
        %v2291 = vunpack.c.l.b16 %v1017
        %v2292 = vunpack.c.h.b16 %v1017
        %v2293 = vunpack.c.l.b16 %v1018
        %v2294 = vunpack.c.h.b16 %v1018
        %v2295 = vunpack.c.l.b16 %v1019
        %v2296 = vunpack.c.h.b16 %v1019
        %v2297 = vunpack.c.l.b16 %v1020
        %v2298 = vunpack.c.h.b16 %v1020
        %v2299 = vpack.c.b16 %v1555, %v1531
        %v2300 = vpack.c.b16 %v1556, %v1532
        %v2301 = vpack.c.b16 %v1557, %v1533
        %v2302 = vpack.c.b16 %v1558, %v1534
        %v2303 = vpack.c.b16 %v1559, %v1535
        %v2304 = vpack.c.b16 %v1560, %v1536
        %v2305 = vpack.c.b16 %v1561, %v1537
        %v2306 = vpack.c.b16 %v1562, %v1538
        %v2307 = vpack.c.b16 %v1563, %v1539
        %v2308 = vpack.c.b16 %v1564, %v1540
        %v2309 = vpack.c.b16 %v1565, %v1541
        %v2310 = vpack.c.b16 %v1566, %v1542
        %v2311 = vpack.c.b16 %v1567, %v1543
        %v2312 = vpack.c.b16 %v1568, %v1544
        %v2313 = vpack.c.b16 %v1569, %v1545
        %v2314 = vpack.c.b16 %v1570, %v1546
        %v2315 = vpack.c.b16 %v1571, %v1547
        %v2316 = vpack.c.b16 %v1572, %v1548
        %v2317 = vpack.c.b16 %v1573, %v1549
        %v2318 = vpack.c.b16 %v1574, %v1550
        %v2319 = vpack.c.b16 %v1575, %v1551
        %v2320 = vpack.c.b16 %v1576, %v1552
        %v2321 = vpack.c.b16 %v1577, %v1553
        %v2322 = vpack.c.b16 %v1578, %v1554
        %v2323 = vpack.c.b16 %v1603, %v1579
        %v2324 = vpack.c.b16 %v1604, %v1580
        %v2325 = vpack.c.b16 %v1605, %v1581
        %v2326 = vpack.c.b16 %v1606, %v1582
        %v2327 = vpack.c.b16 %v1607, %v1583
        %v2328 = vpack.c.b16 %v1608, %v1584
        %v2329 = vpack.c.b16 %v1609, %v1585
        %v2330 = vpack.c.b16 %v1610, %v1586
        %v2331 = vpack.c.b16 %v1611, %v1587
        %v2332 = vpack.c.b16 %v1612, %v1588
        %v2333 = vpack.c.b16 %v1613, %v1589
        %v2334 = vpack.c.b16 %v1614, %v1590
        %v2335 = vpack.c.b16 %v1615, %v1591
        %v2336 = vpack.c.b16 %v1616, %v1592
        %v2337 = vpack.c.b16 %v1617, %v1593
        %v2338 = vpack.c.b16 %v1618, %v1594
        %v2339 = vpack.c.b16 %v1619, %v1595
        %v2340 = vpack.c.b16 %v1620, %v1596
        %v2341 = vpack.c.b16 %v1621, %v1597
        %v2342 = vpack.c.b16 %v1622, %v1598
        %v2343 = vpack.c.b16 %v1623, %v1599
        %v2344 = vpack.c.b16 %v1624, %v1600
        %v2345 = vpack.c.b16 %v1625, %v1601
        %v2346 = vpack.c.b16 %v1626, %v1602
        %v2347 = vpack.c.b16 %v1651, %v1627
        %v2348 = vpack.c.b16 %v1652, %v1628
        %v2349 = vpack.c.b16 %v1653, %v1629
        %v2350 = vpack.c.b16 %v1654, %v1630
        %v2351 = vpack.c.b16 %v1655, %v1631
        %v2352 = vpack.c.b16 %v1656, %v1632
        %v2353 = vpack.c.b16 %v1657, %v1633
        %v2354 = vpack.c.b16 %v1658, %v1634
        %v2355 = vpack.c.b16 %v1659, %v1635
        %v2356 = vpack.c.b16 %v1660, %v1636
        %v2357 = vpack.c.b16 %v1661, %v1637
        %v2358 = vpack.c.b16 %v1662, %v1638
        %v2359 = vpack.c.b16 %v1663, %v1639
        %v2360 = vpack.c.b16 %v1664, %v1640
        %v2361 = vpack.c.b16 %v1665, %v1641
        %v2362 = vpack.c.b16 %v1666, %v1642
        %v2363 = vpack.c.b16 %v1667, %v1643
        %v2364 = vpack.c.b16 %v1668, %v1644
        %v2365 = vpack.c.b16 %v1669, %v1645
        %v2366 = vpack.c.b16 %v1670, %v1646
        %v2367 = vpack.c.b16 %v1671, %v1647
        %v2368 = vpack.c.b16 %v1672, %v1648
        %v2369 = vpack.c.b16 %v1673, %v1649
        %v2370 = vpack.c.b16 %v1674, %v1650
        %v2371 = vpack.c.b16 %v1699, %v1675
        %v2372 = vpack.c.b16 %v1700, %v1676
        %v2373 = vpack.c.b16 %v1701, %v1677
        %v2374 = vpack.c.b16 %v1702, %v1678
        %v2375 = vpack.c.b16 %v1703, %v1679
        %v2376 = vpack.c.b16 %v1704, %v1680
        %v2377 = vpack.c.b16 %v1705, %v1681
        %v2378 = vpack.c.b16 %v1706, %v1682
        %v2379 = vpack.c.b16 %v1707, %v1683
        %v2380 = vpack.c.b16 %v1708, %v1684
        %v2381 = vpack.c.b16 %v1709, %v1685
        %v2382 = vpack.c.b16 %v1710, %v1686
        %v2383 = vpack.c.b16 %v1711, %v1687
        %v2384 = vpack.c.b16 %v1712, %v1688
        %v2385 = vpack.c.b16 %v1713, %v1689
        %v2386 = vpack.c.b16 %v1714, %v1690
        %v2387 = vpack.c.b16 %v1715, %v1691
        %v2388 = vpack.c.b16 %v1716, %v1692
        %v2389 = vpack.c.b16 %v1717, %v1693
        %v2390 = vpack.c.b16 %v1718, %v1694
        %v2391 = vpack.c.b16 %v1719, %v1695
        %v2392 = vpack.c.b16 %v1720, %v1696
        %v2393 = vpack.c.b16 %v1721, %v1697
        %v2394 = vpack.c.b16 %v1722, %v1698
        %v2395 = vpack.c.b16 %v1747, %v1723
        %v2396 = vpack.c.b16 %v1748, %v1724
        %v2397 = vpack.c.b16 %v1749, %v1725
        %v2398 = vpack.c.b16 %v1750, %v1726
        %v2399 = vpack.c.b16 %v1751, %v1727
        %v2400 = vpack.c.b16 %v1752, %v1728
        %v2401 = vpack.c.b16 %v1753, %v1729
        %v2402 = vpack.c.b16 %v1754, %v1730
        %v2403 = vpack.c.b16 %v1755, %v1731
        %v2404 = vpack.c.b16 %v1756, %v1732
        %v2405 = vpack.c.b16 %v1757, %v1733
        %v2406 = vpack.c.b16 %v1758, %v1734
        %v2407 = vpack.c.b16 %v1759, %v1735
        %v2408 = vpack.c.b16 %v1760, %v1736
        %v2409 = vpack.c.b16 %v1761, %v1737
        %v2410 = vpack.c.b16 %v1762, %v1738
        %v2411 = vpack.c.b16 %v1763, %v1739
        %v2412 = vpack.c.b16 %v1764, %v1740
        %v2413 = vpack.c.b16 %v1765, %v1741
        %v2414 = vpack.c.b16 %v1766, %v1742
        %v2415 = vpack.c.b16 %v1767, %v1743
        %v2416 = vpack.c.b16 %v1768, %v1744
        %v2417 = vpack.c.b16 %v1769, %v1745
        %v2418 = vpack.c.b16 %v1770, %v1746
        %v2419 = vpack.c.b16 %v1795, %v1771
        %v2420 = vpack.c.b16 %v1796, %v1772
        %v2421 = vpack.c.b16 %v1797, %v1773
        %v2422 = vpack.c.b16 %v1798, %v1774
        %v2423 = vpack.c.b16 %v1799, %v1775
        %v2424 = vpack.c.b16 %v1800, %v1776
        %v2425 = vpack.c.b16 %v1801, %v1777
        %v2426 = vpack.c.b16 %v1802, %v1778
        %v2427 = vpack.c.b16 %v1803, %v1779
        %v2428 = vpack.c.b16 %v1804, %v1780
        %v2429 = vpack.c.b16 %v1805, %v1781
        %v2430 = vpack.c.b16 %v1806, %v1782
        %v2431 = vpack.c.b16 %v1807, %v1783
        %v2432 = vpack.c.b16 %v1808, %v1784
        %v2433 = vpack.c.b16 %v1809, %v1785
        %v2434 = vpack.c.b16 %v1810, %v1786
        %v2435 = vpack.c.b16 %v1811, %v1787
        %v2436 = vpack.c.b16 %v1812, %v1788
        %v2437 = vpack.c.b16 %v1813, %v1789
        %v2438 = vpack.c.b16 %v1814, %v1790
        %v2439 = vpack.c.b16 %v1815, %v1791
        %v2440 = vpack.c.b16 %v1816, %v1792
        %v2441 = vpack.c.b16 %v1817, %v1793
        %v2442 = vpack.c.b16 %v1818, %v1794
        %v2443 = vpack.c.b16 %v1843, %v1819
        %v2444 = vpack.c.b16 %v1844, %v1820
        %v2445 = vpack.c.b16 %v1845, %v1821
        %v2446 = vpack.c.b16 %v1846, %v1822
        %v2447 = vpack.c.b16 %v1847, %v1823
        %v2448 = vpack.c.b16 %v1848, %v1824
        %v2449 = vpack.c.b16 %v1849, %v1825
        %v2450 = vpack.c.b16 %v1850, %v1826
        %v2451 = vpack.c.b16 %v1851, %v1827
        %v2452 = vpack.c.b16 %v1852, %v1828
        %v2453 = vpack.c.b16 %v1853, %v1829
        %v2454 = vpack.c.b16 %v1854, %v1830
        %v2455 = vpack.c.b16 %v1855, %v1831
        %v2456 = vpack.c.b16 %v1856, %v1832
        %v2457 = vpack.c.b16 %v1857, %v1833
        %v2458 = vpack.c.b16 %v1858, %v1834
        %v2459 = vpack.c.b16 %v1859, %v1835
        %v2460 = vpack.c.b16 %v1860, %v1836
        %v2461 = vpack.c.b16 %v1861, %v1837
        %v2462 = vpack.c.b16 %v1862, %v1838
        %v2463 = vpack.c.b16 %v1863, %v1839
        %v2464 = vpack.c.b16 %v1864, %v1840
        %v2465 = vpack.c.b16 %v1865, %v1841
        %v2466 = vpack.c.b16 %v1866, %v1842
        %v2467 = vpack.c.b16 %v1891, %v1867
        %v2468 = vpack.c.b16 %v1892, %v1868
        %v2469 = vpack.c.b16 %v1893, %v1869
        %v2470 = vpack.c.b16 %v1894, %v1870
        %v2471 = vpack.c.b16 %v1895, %v1871
        %v2472 = vpack.c.b16 %v1896, %v1872
        %v2473 = vpack.c.b16 %v1897, %v1873
        %v2474 = vpack.c.b16 %v1898, %v1874
        %v2475 = vpack.c.b16 %v1899, %v1875
        %v2476 = vpack.c.b16 %v1900, %v1876
        %v2477 = vpack.c.b16 %v1901, %v1877
        %v2478 = vpack.c.b16 %v1902, %v1878
        %v2479 = vpack.c.b16 %v1903, %v1879
        %v2480 = vpack.c.b16 %v1904, %v1880
        %v2481 = vpack.c.b16 %v1905, %v1881
        %v2482 = vpack.c.b16 %v1906, %v1882
        %v2483 = vpack.c.b16 %v1907, %v1883
        %v2484 = vpack.c.b16 %v1908, %v1884
        %v2485 = vpack.c.b16 %v1909, %v1885
        %v2486 = vpack.c.b16 %v1910, %v1886
        %v2487 = vpack.c.b16 %v1911, %v1887
        %v2488 = vpack.c.b16 %v1912, %v1888
        %v2489 = vpack.c.b16 %v1913, %v1889
        %v2490 = vpack.c.b16 %v1914, %v1890
        %v2491 = vpack.c.b16 %v1939, %v1915
        %v2492 = vpack.c.b16 %v1940, %v1916
        %v2493 = vpack.c.b16 %v1941, %v1917
        %v2494 = vpack.c.b16 %v1942, %v1918
        %v2495 = vpack.c.b16 %v1943, %v1919
        %v2496 = vpack.c.b16 %v1944, %v1920
        %v2497 = vpack.c.b16 %v1945, %v1921
        %v2498 = vpack.c.b16 %v1946, %v1922
        %v2499 = vpack.c.b16 %v1947, %v1923
        %v2500 = vpack.c.b16 %v1948, %v1924
        %v2501 = vpack.c.b16 %v1949, %v1925
        %v2502 = vpack.c.b16 %v1950, %v1926
        %v2503 = vpack.c.b16 %v1951, %v1927
        %v2504 = vpack.c.b16 %v1952, %v1928
        %v2505 = vpack.c.b16 %v1953, %v1929
        %v2506 = vpack.c.b16 %v1954, %v1930
        %v2507 = vpack.c.b16 %v1955, %v1931
        %v2508 = vpack.c.b16 %v1956, %v1932
        %v2509 = vpack.c.b16 %v1957, %v1933
        %v2510 = vpack.c.b16 %v1958, %v1934
        %v2511 = vpack.c.b16 %v1959, %v1935
        %v2512 = vpack.c.b16 %v1960, %v1936
        %v2513 = vpack.c.b16 %v1961, %v1937
        %v2514 = vpack.c.b16 %v1962, %v1938
        %v2515 = vpack.c.b16 %v1987, %v1963
        %v2516 = vpack.c.b16 %v1988, %v1964
        %v2517 = vpack.c.b16 %v1989, %v1965
        %v2518 = vpack.c.b16 %v1990, %v1966
        %v2519 = vpack.c.b16 %v1991, %v1967
        %v2520 = vpack.c.b16 %v1992, %v1968
        %v2521 = vpack.c.b16 %v1993, %v1969
        %v2522 = vpack.c.b16 %v1994, %v1970
        %v2523 = vpack.c.b16 %v1995, %v1971
        %v2524 = vpack.c.b16 %v1996, %v1972
        %v2525 = vpack.c.b16 %v1997, %v1973
        %v2526 = vpack.c.b16 %v1998, %v1974
        %v2527 = vpack.c.b16 %v1999, %v1975
        %v2528 = vpack.c.b16 %v2000, %v1976
        %v2529 = vpack.c.b16 %v2001, %v1977
        %v2530 = vpack.c.b16 %v2002, %v1978
        %v2531 = vpack.c.b16 %v2003, %v1979
        %v2532 = vpack.c.b16 %v2004, %v1980
        %v2533 = vpack.c.b16 %v2005, %v1981
        %v2534 = vpack.c.b16 %v2006, %v1982
        %v2535 = vpack.c.b16 %v2007, %v1983
        %v2536 = vpack.c.b16 %v2008, %v1984
        %v2537 = vpack.c.b16 %v2009, %v1985
        %v2538 = vpack.c.b16 %v2010, %v1986
        %v2539 = vpack.c.b16 %v2035, %v2011
        %v2540 = vpack.c.b16 %v2036, %v2012
        %v2541 = vpack.c.b16 %v2037, %v2013
        %v2542 = vpack.c.b16 %v2038, %v2014
        %v2543 = vpack.c.b16 %v2039, %v2015
        %v2544 = vpack.c.b16 %v2040, %v2016
        %v2545 = vpack.c.b16 %v2041, %v2017
        %v2546 = vpack.c.b16 %v2042, %v2018
        %v2547 = vpack.c.b16 %v2043, %v2019
        %v2548 = vpack.c.b16 %v2044, %v2020
        %v2549 = vpack.c.b16 %v2045, %v2021
        %v2550 = vpack.c.b16 %v2046, %v2022
        %v2551 = vpack.c.b16 %v2047, %v2023
        %v2552 = vpack.c.b16 %v2048, %v2024
        %v2553 = vpack.c.b16 %v2049, %v2025
        %v2554 = vpack.c.b16 %v2050, %v2026
        %v2555 = vpack.c.b16 %v2051, %v2027
        %v2556 = vpack.c.b16 %v2052, %v2028
        %v2557 = vpack.c.b16 %v2053, %v2029
        %v2558 = vpack.c.b16 %v2054, %v2030
        %v2559 = vpack.c.b16 %v2055, %v2031
        %v2560 = vpack.c.b16 %v2056, %v2032
        %v2561 = vpack.c.b16 %v2057, %v2033
        %v2562 = vpack.c.b16 %v2058, %v2034
        %v2563 = vpack.c.b16 %v2083, %v2059
        %v2564 = vpack.c.b16 %v2084, %v2060
        %v2565 = vpack.c.b16 %v2085, %v2061
        %v2566 = vpack.c.b16 %v2086, %v2062
        %v2567 = vpack.c.b16 %v2087, %v2063
        %v2568 = vpack.c.b16 %v2088, %v2064
        %v2569 = vpack.c.b16 %v2089, %v2065
        %v2570 = vpack.c.b16 %v2090, %v2066
        %v2571 = vpack.c.b16 %v2091, %v2067
        %v2572 = vpack.c.b16 %v2092, %v2068
        %v2573 = vpack.c.b16 %v2093, %v2069
        %v2574 = vpack.c.b16 %v2094, %v2070
        %v2575 = vpack.c.b16 %v2095, %v2071
        %v2576 = vpack.c.b16 %v2096, %v2072
        %v2577 = vpack.c.b16 %v2097, %v2073
        %v2578 = vpack.c.b16 %v2098, %v2074
        %v2579 = vpack.c.b16 %v2099, %v2075
        %v2580 = vpack.c.b16 %v2100, %v2076
        %v2581 = vpack.c.b16 %v2101, %v2077
        %v2582 = vpack.c.b16 %v2102, %v2078
        %v2583 = vpack.c.b16 %v2103, %v2079
        %v2584 = vpack.c.b16 %v2104, %v2080
        %v2585 = vpack.c.b16 %v2105, %v2081
        %v2586 = vpack.c.b16 %v2106, %v2082
        %v2587 = vpack.c.b16 %v2131, %v2107
        %v2588 = vpack.c.b16 %v2132, %v2108
        %v2589 = vpack.c.b16 %v2133, %v2109
        %v2590 = vpack.c.b16 %v2134, %v2110
        %v2591 = vpack.c.b16 %v2135, %v2111
        %v2592 = vpack.c.b16 %v2136, %v2112
        %v2593 = vpack.c.b16 %v2137, %v2113
        %v2594 = vpack.c.b16 %v2138, %v2114
        %v2595 = vpack.c.b16 %v2139, %v2115
        %v2596 = vpack.c.b16 %v2140, %v2116
        %v2597 = vpack.c.b16 %v2141, %v2117
        %v2598 = vpack.c.b16 %v2142, %v2118
        %v2599 = vpack.c.b16 %v2143, %v2119
        %v2600 = vpack.c.b16 %v2144, %v2120
        %v2601 = vpack.c.b16 %v2145, %v2121
        %v2602 = vpack.c.b16 %v2146, %v2122
        %v2603 = vpack.c.b16 %v2147, %v2123
        %v2604 = vpack.c.b16 %v2148, %v2124
        %v2605 = vpack.c.b16 %v2149, %v2125
        %v2606 = vpack.c.b16 %v2150, %v2126
        %v2607 = vpack.c.b16 %v2151, %v2127
        %v2608 = vpack.c.b16 %v2152, %v2128
        %v2609 = vpack.c.b16 %v2153, %v2129
        %v2610 = vpack.c.b16 %v2154, %v2130
        %v2611 = vpack.c.b16 %v2179, %v2155
        %v2612 = vpack.c.b16 %v2180, %v2156
        %v2613 = vpack.c.b16 %v2181, %v2157
        %v2614 = vpack.c.b16 %v2182, %v2158
        %v2615 = vpack.c.b16 %v2183, %v2159
        %v2616 = vpack.c.b16 %v2184, %v2160
        %v2617 = vpack.c.b16 %v2185, %v2161
        %v2618 = vpack.c.b16 %v2186, %v2162
        %v2619 = vpack.c.b16 %v2187, %v2163
        %v2620 = vpack.c.b16 %v2188, %v2164
        %v2621 = vpack.c.b16 %v2189, %v2165
        %v2622 = vpack.c.b16 %v2190, %v2166
        %v2623 = vpack.c.b16 %v2191, %v2167
        %v2624 = vpack.c.b16 %v2192, %v2168
        %v2625 = vpack.c.b16 %v2193, %v2169
        %v2626 = vpack.c.b16 %v2194, %v2170
        %v2627 = vpack.c.b16 %v2195, %v2171
        %v2628 = vpack.c.b16 %v2196, %v2172
        %v2629 = vpack.c.b16 %v2197, %v2173
        %v2630 = vpack.c.b16 %v2198, %v2174
        %v2631 = vpack.c.b16 %v2199, %v2175
        %v2632 = vpack.c.b16 %v2200, %v2176
        %v2633 = vpack.c.b16 %v2201, %v2177
        %v2634 = vpack.c.b16 %v2202, %v2178
        %v2635 = vpack.c.b16 %v2227, %v2203
        %v2636 = vpack.c.b16 %v2228, %v2204
        %v2637 = vpack.c.b16 %v2229, %v2205
        %v2638 = vpack.c.b16 %v2230, %v2206
        %v2639 = vpack.c.b16 %v2231, %v2207
        %v2640 = vpack.c.b16 %v2232, %v2208
        %v2641 = vpack.c.b16 %v2233, %v2209
        %v2642 = vpack.c.b16 %v2234, %v2210
        %v2643 = vpack.c.b16 %v2235, %v2211
        %v2644 = vpack.c.b16 %v2236, %v2212
        %v2645 = vpack.c.b16 %v2237, %v2213
        %v2646 = vpack.c.b16 %v2238, %v2214
        %v2647 = vpack.c.b16 %v2239, %v2215
        %v2648 = vpack.c.b16 %v2240, %v2216
        %v2649 = vpack.c.b16 %v2241, %v2217
        %v2650 = vpack.c.b16 %v2242, %v2218
        %v2651 = vpack.c.b16 %v2243, %v2219
        %v2652 = vpack.c.b16 %v2244, %v2220
        %v2653 = vpack.c.b16 %v2245, %v2221
        %v2654 = vpack.c.b16 %v2246, %v2222
        %v2655 = vpack.c.b16 %v2247, %v2223
        %v2656 = vpack.c.b16 %v2248, %v2224
        %v2657 = vpack.c.b16 %v2249, %v2225
        %v2658 = vpack.c.b16 %v2250, %v2226
        %v2659 = vpack.c.b16 %v2275, %v2251
        %v2660 = vpack.c.b16 %v2276, %v2252
        %v2661 = vpack.c.b16 %v2277, %v2253
        %v2662 = vpack.c.b16 %v2278, %v2254
        %v2663 = vpack.c.b16 %v2279, %v2255
        %v2664 = vpack.c.b16 %v2280, %v2256
        %v2665 = vpack.c.b16 %v2281, %v2257
        %v2666 = vpack.c.b16 %v2282, %v2258
        %v2667 = vpack.c.b16 %v2283, %v2259
        %v2668 = vpack.c.b16 %v2284, %v2260
        %v2669 = vpack.c.b16 %v2285, %v2261
        %v2670 = vpack.c.b16 %v2286, %v2262
        %v2671 = vpack.c.b16 %v2287, %v2263
        %v2672 = vpack.c.b16 %v2288, %v2264
        %v2673 = vpack.c.b16 %v2289, %v2265
        %v2674 = vpack.c.b16 %v2290, %v2266
        %v2675 = vpack.c.b16 %v2291, %v2267
        %v2676 = vpack.c.b16 %v2292, %v2268
        %v2677 = vpack.c.b16 %v2293, %v2269
        %v2678 = vpack.c.b16 %v2294, %v2270
        %v2679 = vpack.c.b16 %v2295, %v2271
        %v2680 = vpack.c.b16 %v2296, %v2272
        %v2681 = vpack.c.b16 %v2297, %v2273
        %v2682 = vpack.c.b16 %v2298, %v2274
        %3067 = vmatprep.subr.bf16.mxu0 %v2300
        %3068 = vmatpush1.bf16.msra.mxu0 %v2299
        %3069 = vmatprep.subr.bf16.mxu0 %v2324
        %3070 = vmatpush1.bf16.msra.mxu0 %v2323
        %3071 = vmatprep.subr.bf16.mxu0 %v2348
        %3072 = vmatpush1.bf16.msra.mxu0 %v2347
        %3073 = vmatprep.subr.bf16.mxu0 %v2372
        %3074 = vmatpush1.bf16.msra.mxu0 %v2371
        %3075 = vmatprep.subr.bf16.mxu0 %v2396
        %3076 = vmatpush1.bf16.msra.mxu0 %v2395
        %3077 = vmatprep.subr.bf16.mxu0 %v2420
        %3078 = vmatpush1.bf16.msra.mxu0 %v2419
        %3079 = vmatprep.subr.bf16.mxu0 %v2444
        %3080 = vmatpush1.bf16.msra.mxu0 %v2443
        %3081 = vmatprep.subr.bf16.mxu0 %v2468
        %3082 = vmatpush1.bf16.msra.mxu0 %v2467
        %3083 = vmatprep.subr.bf16.mxu0 %v2492
        %3084 = vmatpush1.bf16.msra.mxu0 %v2491
        %3085 = vmatprep.subr.bf16.mxu0 %v2516
        %3086 = vmatpush1.bf16.msra.mxu0 %v2515
        %3087 = vmatprep.subr.bf16.mxu0 %v2540
        %3088 = vmatpush1.bf16.msra.mxu0 %v2539
        %3089 = vmatprep.subr.bf16.mxu0 %v2564
        %3090 = vmatpush1.bf16.msra.mxu0 %v2563
        %3091 = vmatprep.subr.bf16.mxu0 %v2588
        %3092 = vmatpush1.bf16.msra.mxu0 %v2587
        %3093 = vmatprep.subr.bf16.mxu0 %v2612
        %3094 = vmatpush1.bf16.msra.mxu0 %v2611
        %3095 = vmatprep.subr.bf16.mxu0 %v2636
        %3096 = vmatpush1.bf16.msra.mxu0 %v2635
        %3097 = vmatprep.subr.bf16.mxu0 %v2660
        %3098 = vmatpush1.bf16.msra.mxu0 %v2659
        %3099 = vmatprep.mubr.bf16.mxu0 %v636
        %3100 = vmatmul.mubr.bf16.gmra.mrb[0].mxu0 %v635
        %v3101 = vpop.f32.mrb[0].mxu0
        %v3102 = vadd.f32 %v1030, %v3101
        %v3103 = vpop.f32.mrb[0].mxu0
        %v3104 = vadd.f32 %v1034, %v3103
        %v3105 = vpop.f32.mrb[0].mxu0
        %v3106 = vpop.f32.mrb[0].mxu0
        %3107 = vdwg.mxu0
        %3108 = vmatprep.subr.bf16.mxu0 %v2302
        %3109 = vmatpush1.bf16.msra.mxu0 %v2301
        %3110 = vmatprep.subr.bf16.mxu0 %v2326
        %3111 = vmatpush1.bf16.msra.mxu0 %v2325
        %3112 = vmatprep.subr.bf16.mxu0 %v2350
        %3113 = vmatpush1.bf16.msra.mxu0 %v2349
        %3114 = vmatprep.subr.bf16.mxu0 %v2374
        %3115 = vmatpush1.bf16.msra.mxu0 %v2373
        %3116 = vmatprep.subr.bf16.mxu0 %v2398
        %3117 = vmatpush1.bf16.msra.mxu0 %v2397
        %3118 = vmatprep.subr.bf16.mxu0 %v2422
        %3119 = vmatpush1.bf16.msra.mxu0 %v2421
        %3120 = vmatprep.subr.bf16.mxu0 %v2446
        %3121 = vmatpush1.bf16.msra.mxu0 %v2445
        %3122 = vmatprep.subr.bf16.mxu0 %v2470
        %3123 = vmatpush1.bf16.msra.mxu0 %v2469
        %3124 = vmatprep.subr.bf16.mxu0 %v2494
        %3125 = vmatpush1.bf16.msra.mxu0 %v2493
        %3126 = vmatprep.subr.bf16.mxu0 %v2518
        %3127 = vmatpush1.bf16.msra.mxu0 %v2517
        %3128 = vmatprep.subr.bf16.mxu0 %v2542
        %3129 = vmatpush1.bf16.msra.mxu0 %v2541
        %3130 = vmatprep.subr.bf16.mxu0 %v2566
        %3131 = vmatpush1.bf16.msra.mxu0 %v2565
        %3132 = vmatprep.subr.bf16.mxu0 %v2590
        %3133 = vmatpush1.bf16.msra.mxu0 %v2589
        %3134 = vmatprep.subr.bf16.mxu0 %v2614
        %3135 = vmatpush1.bf16.msra.mxu0 %v2613
        %3136 = vmatprep.subr.bf16.mxu0 %v2638
        %3137 = vmatpush1.bf16.msra.mxu0 %v2637
        %3138 = vmatprep.subr.bf16.mxu0 %v2662
        %3139 = vmatpush1.bf16.msra.mxu0 %v2661
        %3140 = vmatprep.mubr.bf16.mxu0 %v636
        %3141 = vmatmul.mubr.bf16.gmra.mrb[0].mxu0 %v635
        %v3142 = vpop.f32.mrb[0].mxu0
        %v3143 = vadd.f32 %v1038, %v3142
        %v3144 = vpop.f32.mrb[0].mxu0
        %v3145 = vadd.f32 %v1042, %v3144
        %v3146 = vpop.f32.mrb[0].mxu0
        %v3147 = vpop.f32.mrb[0].mxu0
        %3148 = vdwg.mxu0
        %3149 = vmatprep.subr.bf16.mxu0 %v2304
        %3150 = vmatpush1.bf16.msra.mxu0 %v2303
        %3151 = vmatprep.subr.bf16.mxu0 %v2328
        %3152 = vmatpush1.bf16.msra.mxu0 %v2327
        %3153 = vmatprep.subr.bf16.mxu0 %v2352
        %3154 = vmatpush1.bf16.msra.mxu0 %v2351
        %3155 = vmatprep.subr.bf16.mxu0 %v2376
        %3156 = vmatpush1.bf16.msra.mxu0 %v2375
        %3157 = vmatprep.subr.bf16.mxu0 %v2400
        %3158 = vmatpush1.bf16.msra.mxu0 %v2399
        %3159 = vmatprep.subr.bf16.mxu0 %v2424
        %3160 = vmatpush1.bf16.msra.mxu0 %v2423
        %3161 = vmatprep.subr.bf16.mxu0 %v2448
        %3162 = vmatpush1.bf16.msra.mxu0 %v2447
        %3163 = vmatprep.subr.bf16.mxu0 %v2472
        %3164 = vmatpush1.bf16.msra.mxu0 %v2471
        %3165 = vmatprep.subr.bf16.mxu0 %v2496
        %3166 = vmatpush1.bf16.msra.mxu0 %v2495
        %3167 = vmatprep.subr.bf16.mxu0 %v2520
        %3168 = vmatpush1.bf16.msra.mxu0 %v2519
        %3169 = vmatprep.subr.bf16.mxu0 %v2544
        %3170 = vmatpush1.bf16.msra.mxu0 %v2543
        %3171 = vmatprep.subr.bf16.mxu0 %v2568
        %3172 = vmatpush1.bf16.msra.mxu0 %v2567
        %3173 = vmatprep.subr.bf16.mxu0 %v2592
        %3174 = vmatpush1.bf16.msra.mxu0 %v2591
        %3175 = vmatprep.subr.bf16.mxu0 %v2616
        %3176 = vmatpush1.bf16.msra.mxu0 %v2615
        %3177 = vmatprep.subr.bf16.mxu0 %v2640
        %3178 = vmatpush1.bf16.msra.mxu0 %v2639
        %3179 = vmatprep.subr.bf16.mxu0 %v2664
        %3180 = vmatpush1.bf16.msra.mxu0 %v2663
        %3181 = vmatprep.mubr.bf16.mxu0 %v636
        %3182 = vmatmul.mubr.bf16.gmra.mrb[0].mxu0 %v635
        %v3183 = vpop.f32.mrb[0].mxu0
        %v3184 = vadd.f32 %v1046, %v3183
        %v3185 = vpop.f32.mrb[0].mxu0
        %v3186 = vadd.f32 %v1050, %v3185
        %v3187 = vpop.f32.mrb[0].mxu0
        %v3188 = vpop.f32.mrb[0].mxu0
        %3189 = vdwg.mxu0
        %3190 = vmatprep.subr.bf16.mxu0 %v2306
        %3191 = vmatpush1.bf16.msra.mxu0 %v2305
        %3192 = vmatprep.subr.bf16.mxu0 %v2330
        %3193 = vmatpush1.bf16.msra.mxu0 %v2329
        %3194 = vmatprep.subr.bf16.mxu0 %v2354
        %3195 = vmatpush1.bf16.msra.mxu0 %v2353
        %3196 = vmatprep.subr.bf16.mxu0 %v2378
        %3197 = vmatpush1.bf16.msra.mxu0 %v2377
        %3198 = vmatprep.subr.bf16.mxu0 %v2402
        %3199 = vmatpush1.bf16.msra.mxu0 %v2401
        %3200 = vmatprep.subr.bf16.mxu0 %v2426
        %3201 = vmatpush1.bf16.msra.mxu0 %v2425
        %3202 = vmatprep.subr.bf16.mxu0 %v2450
        %3203 = vmatpush1.bf16.msra.mxu0 %v2449
        %3204 = vmatprep.subr.bf16.mxu0 %v2474
        %3205 = vmatpush1.bf16.msra.mxu0 %v2473
        %3206 = vmatprep.subr.bf16.mxu0 %v2498
        %3207 = vmatpush1.bf16.msra.mxu0 %v2497
        %3208 = vmatprep.subr.bf16.mxu0 %v2522
        %3209 = vmatpush1.bf16.msra.mxu0 %v2521
        %3210 = vmatprep.subr.bf16.mxu0 %v2546
        %3211 = vmatpush1.bf16.msra.mxu0 %v2545
        %3212 = vmatprep.subr.bf16.mxu0 %v2570
        %3213 = vmatpush1.bf16.msra.mxu0 %v2569
        %3214 = vmatprep.subr.bf16.mxu0 %v2594
        %3215 = vmatpush1.bf16.msra.mxu0 %v2593
        %3216 = vmatprep.subr.bf16.mxu0 %v2618
        %3217 = vmatpush1.bf16.msra.mxu0 %v2617
        %3218 = vmatprep.subr.bf16.mxu0 %v2642
        %3219 = vmatpush1.bf16.msra.mxu0 %v2641
        %3220 = vmatprep.subr.bf16.mxu0 %v2666
        %3221 = vmatpush1.bf16.msra.mxu0 %v2665
        %3222 = vmatprep.mubr.bf16.mxu0 %v636
        %3223 = vmatmul.mubr.bf16.gmra.mrb[0].mxu0 %v635
        %v3224 = vpop.f32.mrb[0].mxu0
        %v3225 = vadd.f32 %v1054, %v3224
        %v3226 = vpop.f32.mrb[0].mxu0
        %v3227 = vadd.f32 %v1058, %v3226
        %v3228 = vpop.f32.mrb[0].mxu0
        %v3229 = vpop.f32.mrb[0].mxu0
        %3230 = vdwg.mxu0
        %3231 = vmatprep.subr.bf16.mxu0 %v2308
        %3232 = vmatpush1.bf16.msra.mxu0 %v2307
        %3233 = vmatprep.subr.bf16.mxu0 %v2332
        %3234 = vmatpush1.bf16.msra.mxu0 %v2331
        %3235 = vmatprep.subr.bf16.mxu0 %v2356
        %3236 = vmatpush1.bf16.msra.mxu0 %v2355
        %3237 = vmatprep.subr.bf16.mxu0 %v2380
        %3238 = vmatpush1.bf16.msra.mxu0 %v2379
        %3239 = vmatprep.subr.bf16.mxu0 %v2404
        %3240 = vmatpush1.bf16.msra.mxu0 %v2403
        %3241 = vmatprep.subr.bf16.mxu0 %v2428
        %3242 = vmatpush1.bf16.msra.mxu0 %v2427
        %3243 = vmatprep.subr.bf16.mxu0 %v2452
        %3244 = vmatpush1.bf16.msra.mxu0 %v2451
        %3245 = vmatprep.subr.bf16.mxu0 %v2476
        %3246 = vmatpush1.bf16.msra.mxu0 %v2475
        %3247 = vmatprep.subr.bf16.mxu0 %v2500
        %3248 = vmatpush1.bf16.msra.mxu0 %v2499
        %3249 = vmatprep.subr.bf16.mxu0 %v2524
        %3250 = vmatpush1.bf16.msra.mxu0 %v2523
        %3251 = vmatprep.subr.bf16.mxu0 %v2548
        %3252 = vmatpush1.bf16.msra.mxu0 %v2547
        %3253 = vmatprep.subr.bf16.mxu0 %v2572
        %3254 = vmatpush1.bf16.msra.mxu0 %v2571
        %3255 = vmatprep.subr.bf16.mxu0 %v2596
        %3256 = vmatpush1.bf16.msra.mxu0 %v2595
        %3257 = vmatprep.subr.bf16.mxu0 %v2620
        %3258 = vmatpush1.bf16.msra.mxu0 %v2619
        %3259 = vmatprep.subr.bf16.mxu0 %v2644
        %3260 = vmatpush1.bf16.msra.mxu0 %v2643
        %3261 = vmatprep.subr.bf16.mxu0 %v2668
        %3262 = vmatpush1.bf16.msra.mxu0 %v2667
        %3263 = vmatprep.mubr.bf16.mxu0 %v636
        %3264 = vmatmul.mubr.bf16.gmra.mrb[0].mxu0 %v635
        %v3265 = vpop.f32.mrb[0].mxu0
        %v3266 = vadd.f32 %v1062, %v3265
        %v3267 = vpop.f32.mrb[0].mxu0
        %v3268 = vadd.f32 %v1066, %v3267
        %v3269 = vpop.f32.mrb[0].mxu0
        %v3270 = vpop.f32.mrb[0].mxu0
        %3271 = vdwg.mxu0
        %3272 = vmatprep.subr.bf16.mxu0 %v2310
        %3273 = vmatpush1.bf16.msra.mxu0 %v2309
        %3274 = vmatprep.subr.bf16.mxu0 %v2334
        %3275 = vmatpush1.bf16.msra.mxu0 %v2333
        %3276 = vmatprep.subr.bf16.mxu0 %v2358
        %3277 = vmatpush1.bf16.msra.mxu0 %v2357
        %3278 = vmatprep.subr.bf16.mxu0 %v2382
        %3279 = vmatpush1.bf16.msra.mxu0 %v2381
        %3280 = vmatprep.subr.bf16.mxu0 %v2406
        %3281 = vmatpush1.bf16.msra.mxu0 %v2405
        %3282 = vmatprep.subr.bf16.mxu0 %v2430
        %3283 = vmatpush1.bf16.msra.mxu0 %v2429
        %3284 = vmatprep.subr.bf16.mxu0 %v2454
        %3285 = vmatpush1.bf16.msra.mxu0 %v2453
        %3286 = vmatprep.subr.bf16.mxu0 %v2478
        %3287 = vmatpush1.bf16.msra.mxu0 %v2477
        %3288 = vmatprep.subr.bf16.mxu0 %v2502
        %3289 = vmatpush1.bf16.msra.mxu0 %v2501
        %3290 = vmatprep.subr.bf16.mxu0 %v2526
        %3291 = vmatpush1.bf16.msra.mxu0 %v2525
        %3292 = vmatprep.subr.bf16.mxu0 %v2550
        %3293 = vmatpush1.bf16.msra.mxu0 %v2549
        %3294 = vmatprep.subr.bf16.mxu0 %v2574
        %3295 = vmatpush1.bf16.msra.mxu0 %v2573
        %3296 = vmatprep.subr.bf16.mxu0 %v2598
        %3297 = vmatpush1.bf16.msra.mxu0 %v2597
        %3298 = vmatprep.subr.bf16.mxu0 %v2622
        %3299 = vmatpush1.bf16.msra.mxu0 %v2621
        %3300 = vmatprep.subr.bf16.mxu0 %v2646
        %3301 = vmatpush1.bf16.msra.mxu0 %v2645
        %3302 = vmatprep.subr.bf16.mxu0 %v2670
        %3303 = vmatpush1.bf16.msra.mxu0 %v2669
        %3304 = vmatprep.mubr.bf16.mxu0 %v636
        %3305 = vmatmul.mubr.bf16.gmra.mrb[0].mxu0 %v635
        %v3306 = vpop.f32.mrb[0].mxu0
        %v3307 = vadd.f32 %v1070, %v3306
        %v3308 = vpop.f32.mrb[0].mxu0
        %v3309 = vadd.f32 %v1074, %v3308
        %v3310 = vpop.f32.mrb[0].mxu0
        %v3311 = vpop.f32.mrb[0].mxu0
        %3312 = vdwg.mxu0
        %3313 = vmatprep.subr.bf16.mxu0 %v2312
        %3314 = vmatpush1.bf16.msra.mxu0 %v2311
        %3315 = vmatprep.subr.bf16.mxu0 %v2336
        %3316 = vmatpush1.bf16.msra.mxu0 %v2335
        %3317 = vmatprep.subr.bf16.mxu0 %v2360
        %3318 = vmatpush1.bf16.msra.mxu0 %v2359
        %3319 = vmatprep.subr.bf16.mxu0 %v2384
        %3320 = vmatpush1.bf16.msra.mxu0 %v2383
        %3321 = vmatprep.subr.bf16.mxu0 %v2408
        %3322 = vmatpush1.bf16.msra.mxu0 %v2407
        %3323 = vmatprep.subr.bf16.mxu0 %v2432
        %3324 = vmatpush1.bf16.msra.mxu0 %v2431
        %3325 = vmatprep.subr.bf16.mxu0 %v2456
        %3326 = vmatpush1.bf16.msra.mxu0 %v2455
        %3327 = vmatprep.subr.bf16.mxu0 %v2480
        %3328 = vmatpush1.bf16.msra.mxu0 %v2479
        %3329 = vmatprep.subr.bf16.mxu0 %v2504
        %3330 = vmatpush1.bf16.msra.mxu0 %v2503
        %3331 = vmatprep.subr.bf16.mxu0 %v2528
        %3332 = vmatpush1.bf16.msra.mxu0 %v2527
        %3333 = vmatprep.subr.bf16.mxu0 %v2552
        %3334 = vmatpush1.bf16.msra.mxu0 %v2551
        %3335 = vmatprep.subr.bf16.mxu0 %v2576
        %3336 = vmatpush1.bf16.msra.mxu0 %v2575
        %3337 = vmatprep.subr.bf16.mxu0 %v2600
        %3338 = vmatpush1.bf16.msra.mxu0 %v2599
        %3339 = vmatprep.subr.bf16.mxu0 %v2624
        %3340 = vmatpush1.bf16.msra.mxu0 %v2623
        %3341 = vmatprep.subr.bf16.mxu0 %v2648
        %3342 = vmatpush1.bf16.msra.mxu0 %v2647
        %3343 = vmatprep.subr.bf16.mxu0 %v2672
        %3344 = vmatpush1.bf16.msra.mxu0 %v2671
        %3345 = vmatprep.mubr.bf16.mxu0 %v636
        %3346 = vmatmul.mubr.bf16.gmra.mrb[0].mxu0 %v635
        %v3347 = vpop.f32.mrb[0].mxu0
        %v3348 = vadd.f32 %v1078, %v3347
        %v3349 = vpop.f32.mrb[0].mxu0
        %v3350 = vadd.f32 %v1082, %v3349
        %v3351 = vpop.f32.mrb[0].mxu0
        %v3352 = vpop.f32.mrb[0].mxu0
        %3353 = vdwg.mxu0
        %3354 = vmatprep.subr.bf16.mxu0 %v2314
        %3355 = vmatpush1.bf16.msra.mxu0 %v2313
        %3356 = vmatprep.subr.bf16.mxu0 %v2338
        %3357 = vmatpush1.bf16.msra.mxu0 %v2337
        %3358 = vmatprep.subr.bf16.mxu0 %v2362
        %3359 = vmatpush1.bf16.msra.mxu0 %v2361
        %3360 = vmatprep.subr.bf16.mxu0 %v2386
        %3361 = vmatpush1.bf16.msra.mxu0 %v2385
        %3362 = vmatprep.subr.bf16.mxu0 %v2410
        %3363 = vmatpush1.bf16.msra.mxu0 %v2409
        %3364 = vmatprep.subr.bf16.mxu0 %v2434
        %3365 = vmatpush1.bf16.msra.mxu0 %v2433
        %3366 = vmatprep.subr.bf16.mxu0 %v2458
        %3367 = vmatpush1.bf16.msra.mxu0 %v2457
        %3368 = vmatprep.subr.bf16.mxu0 %v2482
        %3369 = vmatpush1.bf16.msra.mxu0 %v2481
        %3370 = vmatprep.subr.bf16.mxu0 %v2506
        %3371 = vmatpush1.bf16.msra.mxu0 %v2505
        %3372 = vmatprep.subr.bf16.mxu0 %v2530
        %3373 = vmatpush1.bf16.msra.mxu0 %v2529
        %3374 = vmatprep.subr.bf16.mxu0 %v2554
        %3375 = vmatpush1.bf16.msra.mxu0 %v2553
        %3376 = vmatprep.subr.bf16.mxu0 %v2578
        %3377 = vmatpush1.bf16.msra.mxu0 %v2577
        %3378 = vmatprep.subr.bf16.mxu0 %v2602
        %3379 = vmatpush1.bf16.msra.mxu0 %v2601
        %3380 = vmatprep.subr.bf16.mxu0 %v2626
        %3381 = vmatpush1.bf16.msra.mxu0 %v2625
        %3382 = vmatprep.subr.bf16.mxu0 %v2650
        %3383 = vmatpush1.bf16.msra.mxu0 %v2649
        %3384 = vmatprep.subr.bf16.mxu0 %v2674
        %3385 = vmatpush1.bf16.msra.mxu0 %v2673
        %3386 = vmatprep.mubr.bf16.mxu0 %v636
        %3387 = vmatmul.mubr.bf16.gmra.mrb[0].mxu0 %v635
        %v3388 = vpop.f32.mrb[0].mxu0
        %v3389 = vadd.f32 %v1086, %v3388
        %v3390 = vpop.f32.mrb[0].mxu0
        %v3391 = vadd.f32 %v1090, %v3390
        %v3392 = vpop.f32.mrb[0].mxu0
        %v3393 = vpop.f32.mrb[0].mxu0
        %3394 = vdwg.mxu0
        %3395 = vmatprep.subr.bf16.mxu0 %v2316
        %3396 = vmatpush1.bf16.msra.mxu0 %v2315
        %3397 = vmatprep.subr.bf16.mxu0 %v2340
        %3398 = vmatpush1.bf16.msra.mxu0 %v2339
        %3399 = vmatprep.subr.bf16.mxu0 %v2364
        %3400 = vmatpush1.bf16.msra.mxu0 %v2363
        %3401 = vmatprep.subr.bf16.mxu0 %v2388
        %3402 = vmatpush1.bf16.msra.mxu0 %v2387
        %3403 = vmatprep.subr.bf16.mxu0 %v2412
        %3404 = vmatpush1.bf16.msra.mxu0 %v2411
        %3405 = vmatprep.subr.bf16.mxu0 %v2436
        %3406 = vmatpush1.bf16.msra.mxu0 %v2435
        %3407 = vmatprep.subr.bf16.mxu0 %v2460
        %3408 = vmatpush1.bf16.msra.mxu0 %v2459
        %3409 = vmatprep.subr.bf16.mxu0 %v2484
        %3410 = vmatpush1.bf16.msra.mxu0 %v2483
        %3411 = vmatprep.subr.bf16.mxu0 %v2508
        %3412 = vmatpush1.bf16.msra.mxu0 %v2507
        %3413 = vmatprep.subr.bf16.mxu0 %v2532
        %3414 = vmatpush1.bf16.msra.mxu0 %v2531
        %3415 = vmatprep.subr.bf16.mxu0 %v2556
        %3416 = vmatpush1.bf16.msra.mxu0 %v2555
        %3417 = vmatprep.subr.bf16.mxu0 %v2580
        %3418 = vmatpush1.bf16.msra.mxu0 %v2579
        %3419 = vmatprep.subr.bf16.mxu0 %v2604
        %3420 = vmatpush1.bf16.msra.mxu0 %v2603
        %3421 = vmatprep.subr.bf16.mxu0 %v2628
        %3422 = vmatpush1.bf16.msra.mxu0 %v2627
        %3423 = vmatprep.subr.bf16.mxu0 %v2652
        %3424 = vmatpush1.bf16.msra.mxu0 %v2651
        %3425 = vmatprep.subr.bf16.mxu0 %v2676
        %3426 = vmatpush1.bf16.msra.mxu0 %v2675
        %3427 = vmatprep.mubr.bf16.mxu0 %v636
        %3428 = vmatmul.mubr.bf16.gmra.mrb[0].mxu0 %v635
        %v3429 = vpop.f32.mrb[0].mxu0
        %v3430 = vadd.f32 %v1094, %v3429
        %v3431 = vpop.f32.mrb[0].mxu0
        %v3432 = vadd.f32 %v1098, %v3431
        %v3433 = vpop.f32.mrb[0].mxu0
        %v3434 = vpop.f32.mrb[0].mxu0
        %3435 = vdwg.mxu0
        %3436 = vmatprep.subr.bf16.mxu0 %v2318
        %3437 = vmatpush1.bf16.msra.mxu0 %v2317
        %3438 = vmatprep.subr.bf16.mxu0 %v2342
        %3439 = vmatpush1.bf16.msra.mxu0 %v2341
        %3440 = vmatprep.subr.bf16.mxu0 %v2366
        %3441 = vmatpush1.bf16.msra.mxu0 %v2365
        %3442 = vmatprep.subr.bf16.mxu0 %v2390
        %3443 = vmatpush1.bf16.msra.mxu0 %v2389
        %3444 = vmatprep.subr.bf16.mxu0 %v2414
        %3445 = vmatpush1.bf16.msra.mxu0 %v2413
        %3446 = vmatprep.subr.bf16.mxu0 %v2438
        %3447 = vmatpush1.bf16.msra.mxu0 %v2437
        %3448 = vmatprep.subr.bf16.mxu0 %v2462
        %3449 = vmatpush1.bf16.msra.mxu0 %v2461
        %3450 = vmatprep.subr.bf16.mxu0 %v2486
        %3451 = vmatpush1.bf16.msra.mxu0 %v2485
        %3452 = vmatprep.subr.bf16.mxu0 %v2510
        %3453 = vmatpush1.bf16.msra.mxu0 %v2509
        %3454 = vmatprep.subr.bf16.mxu0 %v2534
        %3455 = vmatpush1.bf16.msra.mxu0 %v2533
        %3456 = vmatprep.subr.bf16.mxu0 %v2558
        %3457 = vmatpush1.bf16.msra.mxu0 %v2557
        %3458 = vmatprep.subr.bf16.mxu0 %v2582
        %3459 = vmatpush1.bf16.msra.mxu0 %v2581
        %3460 = vmatprep.subr.bf16.mxu0 %v2606
        %3461 = vmatpush1.bf16.msra.mxu0 %v2605
        %3462 = vmatprep.subr.bf16.mxu0 %v2630
        %3463 = vmatpush1.bf16.msra.mxu0 %v2629
        %3464 = vmatprep.subr.bf16.mxu0 %v2654
        %3465 = vmatpush1.bf16.msra.mxu0 %v2653
        %3466 = vmatprep.subr.bf16.mxu0 %v2678
        %3467 = vmatpush1.bf16.msra.mxu0 %v2677
        %3468 = vmatprep.mubr.bf16.mxu0 %v636
        %3469 = vmatmul.mubr.bf16.gmra.mrb[0].mxu0 %v635
        %v3470 = vpop.f32.mrb[0].mxu0
        %v3471 = vadd.f32 %v1102, %v3470
        %v3472 = vpop.f32.mrb[0].mxu0
        %v3473 = vadd.f32 %v1106, %v3472
        %v3474 = vpop.f32.mrb[0].mxu0
        %v3475 = vpop.f32.mrb[0].mxu0
        %3476 = vdwg.mxu0
        %3477 = vmatprep.subr.bf16.mxu0 %v2320
        %3478 = vmatpush1.bf16.msra.mxu0 %v2319
        %3479 = vmatprep.subr.bf16.mxu0 %v2344
        %3480 = vmatpush1.bf16.msra.mxu0 %v2343
        %3481 = vmatprep.subr.bf16.mxu0 %v2368
        %3482 = vmatpush1.bf16.msra.mxu0 %v2367
        %3483 = vmatprep.subr.bf16.mxu0 %v2392
        %3484 = vmatpush1.bf16.msra.mxu0 %v2391
        %3485 = vmatprep.subr.bf16.mxu0 %v2416
        %3486 = vmatpush1.bf16.msra.mxu0 %v2415
        %3487 = vmatprep.subr.bf16.mxu0 %v2440
        %3488 = vmatpush1.bf16.msra.mxu0 %v2439
        %3489 = vmatprep.subr.bf16.mxu0 %v2464
        %3490 = vmatpush1.bf16.msra.mxu0 %v2463
        %3491 = vmatprep.subr.bf16.mxu0 %v2488
        %3492 = vmatpush1.bf16.msra.mxu0 %v2487
        %3493 = vmatprep.subr.bf16.mxu0 %v2512
        %3494 = vmatpush1.bf16.msra.mxu0 %v2511
        %3495 = vmatprep.subr.bf16.mxu0 %v2536
        %3496 = vmatpush1.bf16.msra.mxu0 %v2535
        %3497 = vmatprep.subr.bf16.mxu0 %v2560
        %3498 = vmatpush1.bf16.msra.mxu0 %v2559
        %3499 = vmatprep.subr.bf16.mxu0 %v2584
        %3500 = vmatpush1.bf16.msra.mxu0 %v2583
        %3501 = vmatprep.subr.bf16.mxu0 %v2608
        %3502 = vmatpush1.bf16.msra.mxu0 %v2607
        %3503 = vmatprep.subr.bf16.mxu0 %v2632
        %3504 = vmatpush1.bf16.msra.mxu0 %v2631
        %3505 = vmatprep.subr.bf16.mxu0 %v2656
        %3506 = vmatpush1.bf16.msra.mxu0 %v2655
        %3507 = vmatprep.subr.bf16.mxu0 %v2680
        %3508 = vmatpush1.bf16.msra.mxu0 %v2679
        %3509 = vmatprep.mubr.bf16.mxu0 %v636
        %3510 = vmatmul.mubr.bf16.gmra.mrb[0].mxu0 %v635
        %v3511 = vpop.f32.mrb[0].mxu0
        %v3512 = vadd.f32 %v1110, %v3511
        %v3513 = vpop.f32.mrb[0].mxu0
        %v3514 = vadd.f32 %v1114, %v3513
        %v3515 = vpop.f32.mrb[0].mxu0
        %v3516 = vpop.f32.mrb[0].mxu0
        %3517 = vdwg.mxu0
        %3518 = vmatprep.subr.bf16.mxu0 %v2322
        %3519 = vmatpush1.bf16.msra.mxu0 %v2321
        %3520 = vmatprep.subr.bf16.mxu0 %v2346
        %3521 = vmatpush1.bf16.msra.mxu0 %v2345
        %3522 = vmatprep.subr.bf16.mxu0 %v2370
        %3523 = vmatpush1.bf16.msra.mxu0 %v2369
        %3524 = vmatprep.subr.bf16.mxu0 %v2394
        %3525 = vmatpush1.bf16.msra.mxu0 %v2393
        %3526 = vmatprep.subr.bf16.mxu0 %v2418
        %3527 = vmatpush1.bf16.msra.mxu0 %v2417
        %3528 = vmatprep.subr.bf16.mxu0 %v2442
        %3529 = vmatpush1.bf16.msra.mxu0 %v2441
        %3530 = vmatprep.subr.bf16.mxu0 %v2466
        %3531 = vmatpush1.bf16.msra.mxu0 %v2465
        %3532 = vmatprep.subr.bf16.mxu0 %v2490
        %3533 = vmatpush1.bf16.msra.mxu0 %v2489
        %3534 = vmatprep.subr.bf16.mxu0 %v2514
        %3535 = vmatpush1.bf16.msra.mxu0 %v2513
        %3536 = vmatprep.subr.bf16.mxu0 %v2538
        %3537 = vmatpush1.bf16.msra.mxu0 %v2537
        %3538 = vmatprep.subr.bf16.mxu0 %v2562
        %3539 = vmatpush1.bf16.msra.mxu0 %v2561
        %3540 = vmatprep.subr.bf16.mxu0 %v2586
        %3541 = vmatpush1.bf16.msra.mxu0 %v2585
        %3542 = vmatprep.subr.bf16.mxu0 %v2610
        %3543 = vmatpush1.bf16.msra.mxu0 %v2609
        %3544 = vmatprep.subr.bf16.mxu0 %v2634
        %3545 = vmatpush1.bf16.msra.mxu0 %v2633
        %3546 = vmatprep.subr.bf16.mxu0 %v2658
        %3547 = vmatpush1.bf16.msra.mxu0 %v2657
        %3548 = vmatprep.subr.bf16.mxu0 %v2682
        %3549 = vmatpush1.bf16.msra.mxu0 %v2681
        %3550 = vmatprep.mubr.bf16.mxu0 %v636
        %3551 = vmatmul.mubr.bf16.gmra.mrb[0].mxu0 %v635
        %v3552 = vpop.f32.mrb[0].mxu0
        %v3553 = vadd.f32 %v1118, %v3552
        %v3554 = vpop.f32.mrb[0].mxu0
        %v3555 = vadd.f32 %v1122, %v3554
        %v3556 = vpop.f32.mrb[0].mxu0
        %v3557 = vpop.f32.mrb[0].mxu0
        %3558 = vdwg.mxu0
        %v3559 = vtanh.pop %v3102
        %v3560 = vtanh.pop %v3104
        %v3561 = vtanh.pop %v3143
        %v3562 = vtanh.pop %v3145
        %v3563 = vtanh.pop %v3184
        %v3564 = vtanh.pop %v3186
        %v3565 = vtanh.pop %v3225
        %v3566 = vtanh.pop %v3227
        %v3567 = vtanh.pop %v3266
        %v3568 = vtanh.pop %v3268
        %v3569 = vtanh.pop %v3307
        %v3570 = vtanh.pop %v3309
        %v3571 = vtanh.pop %v3348
        %v3572 = vtanh.pop %v3350
        %v3573 = vtanh.pop %v3389
        %v3574 = vtanh.pop %v3391
        %v3575 = vtanh.pop %v3430
        %v3576 = vtanh.pop %v3432
        %v3577 = vtanh.pop %v3471
        %v3578 = vtanh.pop %v3473
        %v3579 = vtanh.pop %v3512
        %v3580 = vtanh.pop %v3514
        %v3581 = vtanh.pop %v3553
        %v3582 = vtanh.pop %v3555
        %3583 = vst [vmem:[%s419] sm:$0xff] %v3559
        %3584 = vst [vmem:[%s419 + $0x8] sm:$0xff] %v3560
        %3585 = vst [vmem:[%s419 + $0x10] sm:$0xff] %v3561
        %3586 = vst [vmem:[%s419 + $0x18] sm:$0xff] %v3562
        %3587 = vst [vmem:[%s419 + $0x20] sm:$0xff] %v3563
        %3588 = vst [vmem:[%s419 + $0x28] sm:$0xff] %v3564
        %3589 = vst [vmem:[%s419 + $0x30] sm:$0xff] %v3565
        %3590 = vst [vmem:[%s419 + $0x38] sm:$0xff] %v3566
        %3591 = vst [vmem:[%s419 + $0x40] sm:$0xff] %v3567
        %3592 = vst [vmem:[%s419 + $0x48] sm:$0xff] %v3568
        %3593 = vst [vmem:[%s419 + $0x50] sm:$0xff] %v3569
        %3594 = vst [vmem:[%s419 + $0x58] sm:$0xff] %v3570
        %3595 = vst [vmem:[%s419 + $0x60] sm:$0xff] %v3571
        %3596 = vst [vmem:[%s419 + $0x68] sm:$0xff] %v3572
        %3597 = vst [vmem:[%s419 + $0x70] sm:$0xff] %v3573
        %3598 = vst [vmem:[%s419 + $0x78] sm:$0xff] %v3574
        %3599 = vst [vmem:[%s419 + $0x80] sm:$0xff] %v3575
        %3600 = vst [vmem:[%s419 + $0x88] sm:$0xff] %v3576
        %3601 = vst [vmem:[%s419 + $0x90] sm:$0xff] %v3577
        %3602 = vst [vmem:[%s419 + $0x98] sm:$0xff] %v3578
        %3603 = vst [vmem:[%s419 + $0xa0] sm:$0xff] %v3579
        %3604 = vst [vmem:[%s419 + $0xa8] sm:$0xff] %v3580
        %3605 = vst [vmem:[%s419 + $0xb0] sm:$0xff] %v3581
        %3606 = vst [vmem:[%s419 + $0xb8] sm:$0xff] %v3582
        %s3607 = sand.u32 %s211, 1
        %s3608 = scalar_lea.sflag [#allocation4], %s3607
        %s3609 = sand.u32 %s211, 1
        %s3610 = smul.addr %s3609, 192
        %s3611 = scalar_lea.vmem [#allocation14], %s3610
        // Predicated region
        $region77: #{tpu_custom_call.1} parent=47 // pred_check
          %p3612 = pneg %p221
        $region78: #{tpu_custom_call.1} parent=47 // pred_check_branch
          %3614 = sbr.rel (%p3612) target = $region80
        $region79: #{tpu_custom_call.1} parent=47 // pred_region
          %s3615 = smul.u32 24, %s31
          %s3617 = ssub.s32 3072, 3072
          %3618 = vsyncadd %s3608, %s3617
          %s3619 = smul.addr %s32, 96
          %s3620 = sadd.s32 %s3615, %s3619
          %s3621 = smul.addr %s3620, 128
          %s3622 = scalar_lea.hbm %s7, %s3621
          %s3624 = sshll.u32 %s3611, 4
          %s3625 = int_to_ptr.vmem [resolvable:$true] %s3624
          %3627 = dma.vmem_to_hbm [thread:$0]  %s3625, 3072, %s3622, %s3608
        $region80: #{tpu_custom_call.1} parent=47 // pred_fallthru
          _
      $region48: #{tpu_custom_call.1} parent=5 // pred_fallthru
        _
      %p3628 = scmp.le.s32.totalorder 2, %s22
      // Predicated region
      $region81: #{tpu_custom_call.1} parent=5 // pred_check
        %p3629 = pneg %p3628
      $region82: #{tpu_custom_call.1} parent=5 // pred_check_branch
        %3631 = sbr.rel (%p3629) target = $region84
      $region83: #{tpu_custom_call.1} parent=5 // pred_region
        %s3632 = ssub.s32 %s22, 2
        // Predicated region
        $region85: #{tpu_custom_call.1} parent=83 // pred_check
          %p3633 = pneg %p227
        $region86: #{tpu_custom_call.1} parent=83 // pred_check_branch
          %3635 = sbr.rel (%p3633) target = $region88
        $region87: #{tpu_custom_call.1} parent=83 // pred_region
          %s3636 = sand.u32 %s212, 1
          %s3637 = scalar_lea.sflag [#allocation4], %s3636
          %s3638 = sand.u32 %s212, 1
          %s3639 = smul.addr %s3638, 192
          %s3640 = scalar_lea.vmem [#allocation14], %s3639
          %3641 = dma.done %s3637, 3072
        $region88: #{tpu_custom_call.1} parent=83 // pred_fallthru
          _
      $region84: #{tpu_custom_call.1} parent=5 // pred_fallthru
        _
    $region6: #{tpu_custom_call.1} parent=1 // loop_footer
      %s26 = sadd.s32 1, %s22
    $region7: #{tpu_custom_call.1} parent=1 // loop_footer_branch
      %21 = sbr.rel target = $region3
    $region8: #{tpu_custom_call.1} parent=1 // loop_exit
      _
    %3642 = vsyncpa [#allocation3], 1
    %s3643 = scalar_lea.sflag [#allocation3], 1
    %3644 = vsyncpa %s3643, 1
    %3645 = vsyncpa [#allocation6], 1
    %3646 = vsyncpa [#allocation9], 1
    %3647 = vsyncpa [#allocation12], 1
    %s3648 = scalar_lea.sflag [#allocation12], 1
    %3649 = vsyncpa %s3648, 1
    %3650 = vsyncpa [#allocation4], 1
    %s3651 = scalar_lea.sflag [#allocation4], 1
    %3652 = vsyncpa %s3651, 1

</llo_original>
